<compile_context>
chip_gen: v6e
topology: v6e:2x2x1
jax: 0.10.0
libtpu: 0.0.40
codegen_flags: <defaults>
</compile_context>

<pallas_src>
import functools

import jax
import jax.numpy as jnp
from jax.experimental import pallas as pl
from jax.experimental.pallas import tpu as pltpu


# ---------------------------------------------------------------------------
# Weight packing helpers (wrapper-side, tiny arrays).
# ---------------------------------------------------------------------------
def _pack_conv3x3(w):
    """Conv2d weight (Cout, Cin, 3, 3) -> (9*Cin, Cout), tap-major (kh*3+kw, ci)."""
    cout, cin, k, _ = w.shape
    return jnp.transpose(w, (2, 3, 1, 0)).reshape(k * k * cin, cout)


def _pack_cnn0_phases(w0):
    """Conv2d(3,16,3,stride=2,pad=1) weight -> weights for a 2x2-tap stride-1
    conv over the 4-phase (even/odd row x col) decomposition of the padded input.

    Returns (2*2*4*Cin, Cout); patch column order is tap (di*2+dj) major,
    then phase (2*pr+pc), then ci -- matching the in-kernel im2col order.
    """
    cout, cin = w0.shape[0], w0.shape[1]
    wt = jnp.transpose(w0, (2, 3, 1, 0))            # (kh, kw, ci, co)
    pk = jnp.zeros((2, 2, 4, cin, cout), jnp.float32)
    kmap = ((0, 0), (1, 0), (0, 1))                 # kernel idx -> (parity, tap offset)
    for kh in range(3):
        pr, di = kmap[kh]
        for kw in range(3):
            pc, dj = kmap[kw]
            pk = pk.at[di, dj, 2 * pr + pc].set(wt[kh, kw])
    return pk.reshape(2 * 2 * 4 * cin, cout)


def _pack_cnn3_phases(wt3):
    """ConvTranspose2d(16,4,4,stride=2,pad=1) weight (Cin, Cout, 4, 4) ->
    a 3x3-tap conv over the 1-px zero-padded h2, with the 4 sub-pixel output
    phases packed as 4*Cout output channels: (9*Cin, 4*Cout)."""
    cin, cout = wt3.shape[0], wt3.shape[1]
    pk = jnp.zeros((3, 3, cin, 4 * cout), jnp.float32)
    # slice offset (into padded h2) -> transposed-conv kernel index,
    # for even / odd output parity.
    kmap = ({0: 3, 1: 1}, {1: 2, 2: 0})
    for pr in range(2):
        for rr, kh in kmap[pr].items():
            for pc in range(2):
                for cc, kw in kmap[pc].items():
                    phase = 2 * pr + pc
                    pk = pk.at[rr, cc, :, phase * cout:(phase + 1) * cout].set(
                        wt3[:, :, kh, kw])
    return pk.reshape(3 * 3 * cin, 4 * cout)


# ---------------------------------------------------------------------------
# Fused kernel: one batch element per grid step, intermediates in VMEM scratch.
# ---------------------------------------------------------------------------
def _head_fused_kernel(p_ref, w0_ref, w1_ref, w2_ref, w3_ref,
                       b0_ref, b1_ref, b2_ref, b3_ref,
                       o_ref, h0_ref, h1_ref, h2_ref, *, Ho, Wo, slope):
    rows = Ho * Wo

    def lrelu(a):
        return jnp.where(a >= 0.0, a, slope * a)

    def im2col(src, k):
        # src: (Hp, Wp, C) value or VMEM scratch ref -> (rows, k*k*C), tap-major.
        c = src.shape[-1]
        taps = [src[i:i + Ho, j:j + Wo, :] for i in range(k) for j in range(k)]
        return jnp.concatenate(taps, axis=-1).reshape(rows, k * k * c)

    def conv(src, k, w_ref, b_ref, relu):
        # All k*k taps fused into a single MXU matmul (f32 accumulation).
        patch = im2col(src, k).astype(w_ref.dtype)
        acc = jnp.dot(patch, w_ref[...], preferred_element_type=jnp.float32)
        acc = acc + b_ref[...]
        return lrelu(acc) if relu else acc

    def store_padded(h_ref, val):
        # write (rows, C) into the interior of a zeroed (Ho+2, Wo+2, C) scratch.
        h_ref[...] = jnp.zeros_like(h_ref)
        h_ref[1:Ho + 1, 1:Wo + 1, :] = (
            val.reshape(Ho, Wo, h_ref.shape[-1]).astype(h_ref.dtype))

    # cnn0: 3x3 stride-2 conv == 2x2 conv over the 4-phase input (contraction 48)
    store_padded(h0_ref, conv(p_ref[0], 2, w0_ref, b0_ref, relu=True))
    # cnn1 / cnn2: 3x3 pad-1 convs, 9 taps fused into one 144-contraction matmul
    store_padded(h1_ref, conv(h0_ref, 3, w1_ref, b1_ref, relu=True))
    store_padded(h2_ref, conv(h1_ref, 3, w2_ref, b2_ref, relu=True))
    # cnn3: ConvTranspose2d via 4 sub-pixel phases packed into 16 output channels
    o_ref[0] = conv(h2_ref, 3, w3_ref, b3_ref, relu=False)


def head_forward(x_nchw, params, matmul_dtype=jnp.bfloat16):
    """Pallas implementation of Head.forward(x, feat=False).

    x_nchw: (N, 3, H, W), even H and W.  Returns (N, 4, H, W) float32.
    """
    (w0, b0, w1, b1, w2, b2, wt3, b3) = params
    N, cin, H, W = x_nchw.shape
    assert cin == 3 and H % 2 == 0 and W % 2 == 0, (cin, H, W)
    Ho, Wo = H // 2, W // 2
    rows = Ho * Wo

    # 4-phase (even/odd row x col) decomposition of the 1-px padded input.
    x = jnp.transpose(x_nchw, (0, 2, 3, 1)).astype(jnp.float32)          # NHWC
    xp = jnp.pad(x, ((0, 0), (1, 1), (1, 1), (0, 0)))
    phases = jnp.concatenate(
        [xp[:, 0::2, 0::2, :], xp[:, 0::2, 1::2, :],
         xp[:, 1::2, 0::2, :], xp[:, 1::2, 1::2, :]],
        axis=-1).astype(matmul_dtype)                                    # (N,Ho+1,Wo+1,12)

    w0p = _pack_cnn0_phases(w0).astype(matmul_dtype)                     # (48, 16)
    w1p = _pack_conv3x3(w1).astype(matmul_dtype)                         # (144, 16)
    w2p = _pack_conv3x3(w2).astype(matmul_dtype)                         # (144, 16)
    w3p = _pack_cnn3_phases(wt3).astype(matmul_dtype)                    # (144, 16)
    b0r = b0.reshape(1, 16).astype(jnp.float32)
    b1r = b1.reshape(1, 16).astype(jnp.float32)
    b2r = b2.reshape(1, 16).astype(jnp.float32)
    b3r = jnp.tile(b3, 4).reshape(1, 16).astype(jnp.float32)             # phase-packed

    kernel = functools.partial(_head_fused_kernel, Ho=Ho, Wo=Wo, slope=0.2)

    def wspec(shape):
        return pl.BlockSpec(shape, lambda n: (0, 0))

    out = pl.pallas_call(
        kernel,
        out_shape=jax.ShapeDtypeStruct((N, rows, 16), jnp.float32),
        grid=(N,),
        in_specs=[
            pl.BlockSpec((1, Ho + 1, Wo + 1, 12), lambda n: (n, 0, 0, 0)),
            wspec((2 * 2 * 12, 16)), wspec((9 * 16, 16)),
            wspec((9 * 16, 16)), wspec((9 * 16, 16)),
            wspec((1, 16)), wspec((1, 16)), wspec((1, 16)), wspec((1, 16)),
        ],
        out_specs=pl.BlockSpec((1, rows, 16), lambda n: (n, 0, 0)),
        # f32 scratch keeps bias / LeakyReLU math exact; matmul inputs are cast.
        scratch_shapes=[pltpu.VMEM((Ho + 2, Wo + 2, 16), jnp.float32)] * 3,
        compiler_params=pltpu.CompilerParams(
            dimension_semantics=("parallel",),      # batch tiles across megacore TCs
            vmem_limit_bytes=32 * 1024 * 1024),
    )(phases, w0p, w1p, w2p, w3p, b0r, b1r, b2r, b3r)

    # Un-pack the 4 sub-pixel phases: (N, Ho*Wo, 16) -> (N, 2Ho, 2Wo, 4) -> NCHW.
    y = out.reshape(N, Ho, Wo, 2, 2, 4)
    y = jnp.transpose(y, (0, 1, 3, 2, 4, 5)).reshape(N, 2 * Ho, 2 * Wo, 4)
    return jnp.transpose(y, (0, 3, 1, 2))


# ---------------------------------------------------------------------------
# Pure-JAX (lax) reference, mirrors the PyTorch module exactly.
# ---------------------------------------------------------------------------
def head_reference(x, params):
    (w0, b0, w1, b1, w2, b2, wt3, b3) = params
    P = jax.lax.Precision.HIGHEST

    def conv(h, w, b, stride, pad, lhs_dilation=(1, 1)):
        y = jax.lax.conv_general_dilated(
            h, w, window_strides=(stride, stride),
            padding=[(pad, pad), (pad, pad)], lhs_dilation=lhs_dilation,
            dimension_numbers=("NCHW", "OIHW", "NCHW"), precision=P)
        return y + b[None, :, None, None]

    lrelu = lambda t: jnp.where(t >= 0, t, 0.2 * t)
    x0 = conv(x, w0, b0, 2, 1)
    x1 = conv(lrelu(x0), w1, b1, 1, 1)
    x2 = conv(lrelu(x1), w2, b2, 1, 1)
    w3_eq = jnp.transpose(wt3, (1, 0, 2, 3))[:, :, ::-1, ::-1]
    x3 = conv(lrelu(x2), w3_eq, b3, 1, 2, lhs_dilation=(2, 2))
    return x3


if __name__ == "__main__":
    key = jax.random.PRNGKey(0)
    ks = jax.random.split(key, 9)

    def w_init(k, shape):
        fan_in = shape[1] * shape[2] * shape[3]
        return jax.random.normal(k, shape, jnp.float32) / jnp.sqrt(float(fan_in))

    # Parameter shapes taken from Head.__init__ (deterministic synthetic init).
    w0 = w_init(ks[0], (16, 3, 3, 3))                    # Conv2d(3,16,3,2,1)
    b0 = 0.05 * jax.random.normal(ks[1], (16,), jnp.float32)
    w1 = w_init(ks[2], (16, 16, 3, 3))                   # Conv2d(16,16,3,1,1)
    b1 = 0.05 * jax.random.normal(ks[3], (16,), jnp.float32)
    w2 = w_init(ks[4], (16, 16, 3, 3))                   # Conv2d(16,16,3,1,1)
    b2 = 0.05 * jax.random.normal(ks[5], (16,), jnp.float32)
    wt3 = w_init(ks[6], (16, 4, 4, 4))                   # ConvTranspose2d(16,4,4,2,1)
    b3 = 0.05 * jax.random.normal(ks[7], (4,), jnp.float32)
    params = (w0, b0, w1, b1, w2, b2, wt3, b3)

    x = jax.random.normal(ks[8], (2, 3, 16, 16), jnp.float32)      # NCHW like PyTorch

    fwd_f32 = jax.jit(functools.partial(head_forward, matmul_dtype=jnp.float32))
    fwd_bf16 = jax.jit(functools.partial(head_forward, matmul_dtype=jnp.bfloat16))

    out_f32 = jax.block_until_ready(fwd_f32(x, params))
    out_bf16 = jax.block_until_ready(fwd_bf16(x, params))
    assert out_f32.shape == (2, 4, 16, 16), out_f32.shape
    assert out_bf16.shape == (2, 4, 16, 16), out_bf16.shape

    ref = head_reference(x, params)
    err_f32 = float(jnp.max(jnp.abs(out_f32 - ref)))
    err_bf16 = float(jnp.max(jnp.abs(out_bf16 - ref)))
    assert err_f32 < 5e-2, f"f32 path max abs error vs reference: {err_f32}"
    assert err_bf16 < 1.5e-1, f"bf16 path max abs error vs reference: {err_bf16}"

    print("KERNEL_OK")
</pallas_src>

<mosaic_0001>
module attributes {stable_mosaic.version = 11 : i64} {
  func.func @_head_fused_kernel(%arg0: i32, %arg1: memref<1x9x9x12xf32, #tpu.memory_space<vmem>>, %arg2: memref<48x16xf32, #tpu.memory_space<vmem>>, %arg3: memref<144x16xf32, #tpu.memory_space<vmem>>, %arg4: memref<144x16xf32, #tpu.memory_space<vmem>>, %arg5: memref<144x16xf32, #tpu.memory_space<vmem>>, %arg6: memref<1x16xf32, #tpu.memory_space<vmem>>, %arg7: memref<1x16xf32, #tpu.memory_space<vmem>>, %arg8: memref<1x16xf32, #tpu.memory_space<vmem>>, %arg9: memref<1x16xf32, #tpu.memory_space<vmem>>, %arg10: memref<1x64x16xf32, #tpu.memory_space<vmem>>, %arg11: memref<10x10x16xf32, #tpu.memory_space<vmem>>, %arg12: memref<10x10x16xf32, #tpu.memory_space<vmem>>, %arg13: memref<10x10x16xf32, #tpu.memory_space<vmem>>) attributes {dimension_semantics = [#tpu.dimension_semantics<parallel>], iteration_bounds = array<i64: 2>, scalar_prefetch = 0 : i64, scratch_operands = 3 : i64, tpu.core_type = #tpu.core_type<tc>, window_params = [{transform_indices = @transform_0, window_bounds = array<i64: 1, 9, 9, 12>}, {pipeline_mode = #tpu.pipeline_mode<synchronous>, transform_indices = @transform_1, window_bounds = array<i64: 48, 16>}, {pipeline_mode = #tpu.pipeline_mode<synchronous>, transform_indices = @transform_2, window_bounds = array<i64: 144, 16>}, {pipeline_mode = #tpu.pipeline_mode<synchronous>, transform_indices = @transform_3, window_bounds = array<i64: 144, 16>}, {pipeline_mode = #tpu.pipeline_mode<synchronous>, transform_indices = @transform_4, window_bounds = array<i64: 144, 16>}, {pipeline_mode = #tpu.pipeline_mode<synchronous>, transform_indices = @transform_5, window_bounds = array<i64: 1, 16>}, {pipeline_mode = #tpu.pipeline_mode<synchronous>, transform_indices = @transform_6, window_bounds = array<i64: 1, 16>}, {pipeline_mode = #tpu.pipeline_mode<synchronous>, transform_indices = @transform_7, window_bounds = array<i64: 1, 16>}, {pipeline_mode = #tpu.pipeline_mode<synchronous>, transform_indices = @transform_8, window_bounds = array<i64: 1, 16>}, {transform_indices = @transform_9, window_bounds = array<i64: 1, 64, 16>}]} {
    %c0 = arith.constant 0 : index
    %c0_0 = arith.constant 0 : index
    %c0_1 = arith.constant 0 : index
    %c0_2 = arith.constant 0 : index
    %0 = vector.load %arg1[%c0, %c0_0, %c0_1, %c0_2] : memref<1x9x9x12xf32, #tpu.memory_space<vmem>>, vector<1x9x9x12xf32>
    %1 = vector.shape_cast %0 : vector<1x9x9x12xf32> to vector<9x9x12xf32>
    %2 = vector.extract_strided_slice %1 {offsets = [0, 0, 0], sizes = [8, 8, 12], strides = [1, 1, 1]} : vector<9x9x12xf32> to vector<8x8x12xf32>
    %3 = vector.extract_strided_slice %1 {offsets = [0, 1, 0], sizes = [8, 8, 12], strides = [1, 1, 1]} : vector<9x9x12xf32> to vector<8x8x12xf32>
    %4 = vector.extract_strided_slice %1 {offsets = [1, 0, 0], sizes = [8, 8, 12], strides = [1, 1, 1]} : vector<9x9x12xf32> to vector<8x8x12xf32>
    %5 = vector.extract_strided_slice %1 {offsets = [1, 1, 0], sizes = [8, 8, 12], strides = [1, 1, 1]} : vector<9x9x12xf32> to vector<8x8x12xf32>
    %6 = tpu.concatenate %2, %3, %4, %5 in 2 : vector<8x8x12xf32>, vector<8x8x12xf32>, vector<8x8x12xf32>, vector<8x8x12xf32> -> vector<8x8x48xf32>
    %7 = vector.shape_cast %6 : vector<8x8x48xf32> to vector<64x48xf32>
    %c0_3 = arith.constant 0 : index
    %c0_4 = arith.constant 0 : index
    %8 = vector.load %arg2[%c0_3, %c0_4] : memref<48x16xf32, #tpu.memory_space<vmem>>, vector<48x16xf32>
    %cst = arith.constant dense<0.000000e+00> : vector<64x16xf32>
    %9 = tpu.matmul %7, %8, %cst {dimension_numbers = #tpu.dot_dimension_numbers<[1], [0], [0], [1], [0, 0, 1, 1], [], []>} : vector<64x48xf32>, vector<48x16xf32>, vector<64x16xf32> -> vector<64x16xf32>
    %c0_5 = arith.constant 0 : index
    %c0_6 = arith.constant 0 : index
    %10 = vector.load %arg6[%c0_5, %c0_6] : memref<1x16xf32, #tpu.memory_space<vmem>>, vector<1x16xf32>
    %11 = vector.broadcast %10 : vector<1x16xf32> to vector<64x16xf32>
    %12 = arith.addf %9, %11 : vector<64x16xf32>
    %cst_7 = arith.constant 0.000000e+00 : f32
    %13 = vector.broadcast %cst_7 : f32 to vector<64x16xf32>
    %14 = arith.cmpf oge, %12, %13 : vector<64x16xf32>
    %cst_8 = arith.constant 2.000000e-01 : f32
    %15 = vector.broadcast %cst_8 : f32 to vector<64x16xf32>
    %16 = arith.mulf %15, %12 : vector<64x16xf32>
    %17 = arith.select %14, %12, %16 : vector<64x16xi1>, vector<64x16xf32>
    %cst_9 = arith.constant 0.000000e+00 : f32
    %18 = vector.broadcast %cst_9 : f32 to vector<10x10x16xf32>
    %c0_10 = arith.constant 0 : index
    %c0_11 = arith.constant 0 : index
    %c0_12 = arith.constant 0 : index
    %19 = vector.load %arg11[%c0_10, %c0_11, %c0_12] : memref<10x10x16xf32, #tpu.memory_space<vmem>>, vector<10x10x16xf32>
    tpu.vector_store %arg11[%c0_10, %c0_11, %c0_12], %18 {strides = array<i32>} : memref<10x10x16xf32, #tpu.memory_space<vmem>>, vector<10x10x16xf32>,
    %20 = vector.shape_cast %17 : vector<64x16xf32> to vector<8x8x16xf32>
    %c1 = arith.constant 1 : index
    %c1_13 = arith.constant 1 : index
    %c0_14 = arith.constant 0 : index
    %21 = vector.load %arg11[%c1, %c1_13, %c0_14] : memref<10x10x16xf32, #tpu.memory_space<vmem>>, vector<8x8x16xf32>
    tpu.vector_store %arg11[%c1, %c1_13, %c0_14], %20 {strides = array<i32>} : memref<10x10x16xf32, #tpu.memory_space<vmem>>, vector<8x8x16xf32>,
    %c0_15 = arith.constant 0 : index
    %c0_16 = arith.constant 0 : index
    %c0_17 = arith.constant 0 : index
    %22 = vector.load %arg11[%c0_15, %c0_16, %c0_17] : memref<10x10x16xf32, #tpu.memory_space<vmem>>, vector<8x8x16xf32>
    %c0_18 = arith.constant 0 : index
    %c1_19 = arith.constant 1 : index
    %c0_20 = arith.constant 0 : index
    %23 = vector.load %arg11[%c0_18, %c1_19, %c0_20] : memref<10x10x16xf32, #tpu.memory_space<vmem>>, vector<8x8x16xf32>
    %c0_21 = arith.constant 0 : index
    %c2 = arith.constant 2 : index
    %c0_22 = arith.constant 0 : index
    %24 = vector.load %arg11[%c0_21, %c2, %c0_22] : memref<10x10x16xf32, #tpu.memory_space<vmem>>, vector<8x8x16xf32>
    %c1_23 = arith.constant 1 : index
    %c0_24 = arith.constant 0 : index
    %c0_25 = arith.constant 0 : index
    %25 = vector.load %arg11[%c1_23, %c0_24, %c0_25] : memref<10x10x16xf32, #tpu.memory_space<vmem>>, vector<8x8x16xf32>
    %c1_26 = arith.constant 1 : index
    %c1_27 = arith.constant 1 : index
    %c0_28 = arith.constant 0 : index
    %26 = vector.load %arg11[%c1_26, %c1_27, %c0_28] : memref<10x10x16xf32, #tpu.memory_space<vmem>>, vector<8x8x16xf32>
    %c1_29 = arith.constant 1 : index
    %c2_30 = arith.constant 2 : index
    %c0_31 = arith.constant 0 : index
    %27 = vector.load %arg11[%c1_29, %c2_30, %c0_31] : memref<10x10x16xf32, #tpu.memory_space<vmem>>, vector<8x8x16xf32>
    %c2_32 = arith.constant 2 : index
    %c0_33 = arith.constant 0 : index
    %c0_34 = arith.constant 0 : index
    %28 = vector.load %arg11[%c2_32, %c0_33, %c0_34] : memref<10x10x16xf32, #tpu.memory_space<vmem>>, vector<8x8x16xf32>
    %c2_35 = arith.constant 2 : index
    %c1_36 = arith.constant 1 : index
    %c0_37 = arith.constant 0 : index
    %29 = vector.load %arg11[%c2_35, %c1_36, %c0_37] : memref<10x10x16xf32, #tpu.memory_space<vmem>>, vector<8x8x16xf32>
    %c2_38 = arith.constant 2 : index
    %c2_39 = arith.constant 2 : index
    %c0_40 = arith.constant 0 : index
    %30 = vector.load %arg11[%c2_38, %c2_39, %c0_40] : memref<10x10x16xf32, #tpu.memory_space<vmem>>, vector<8x8x16xf32>
    %31 = tpu.concatenate %22, %23, %24, %25, %26, %27, %28, %29, %30 in 2 : vector<8x8x16xf32>, vector<8x8x16xf32>, vector<8x8x16xf32>, vector<8x8x16xf32>, vector<8x8x16xf32>, vector<8x8x16xf32>, vector<8x8x16xf32>, vector<8x8x16xf32>, vector<8x8x16xf32> -> vector<8x8x144xf32>
    %32 = vector.shape_cast %31 : vector<8x8x144xf32> to vector<64x144xf32>
    %c0_41 = arith.constant 0 : index
    %c0_42 = arith.constant 0 : index
    %33 = vector.load %arg3[%c0_41, %c0_42] : memref<144x16xf32, #tpu.memory_space<vmem>>, vector<144x16xf32>
    %cst_43 = arith.constant dense<0.000000e+00> : vector<64x16xf32>
    %34 = tpu.matmul %32, %33, %cst_43 {dimension_numbers = #tpu.dot_dimension_numbers<[1], [0], [0], [1], [0, 0, 1, 1], [], []>} : vector<64x144xf32>, vector<144x16xf32>, vector<64x16xf32> -> vector<64x16xf32>
    %c0_44 = arith.constant 0 : index
    %c0_45 = arith.constant 0 : index
    %35 = vector.load %arg7[%c0_44, %c0_45] : memref<1x16xf32, #tpu.memory_space<vmem>>, vector<1x16xf32>
    %36 = vector.broadcast %35 : vector<1x16xf32> to vector<64x16xf32>
    %37 = arith.addf %34, %36 : vector<64x16xf32>
    %cst_46 = arith.constant 0.000000e+00 : f32
    %38 = vector.broadcast %cst_46 : f32 to vector<64x16xf32>
    %39 = arith.cmpf oge, %37, %38 : vector<64x16xf32>
    %cst_47 = arith.constant 2.000000e-01 : f32
    %40 = vector.broadcast %cst_47 : f32 to vector<64x16xf32>
    %41 = arith.mulf %40, %37 : vector<64x16xf32>
    %42 = arith.select %39, %37, %41 : vector<64x16xi1>, vector<64x16xf32>
    %cst_48 = arith.constant 0.000000e+00 : f32
    %43 = vector.broadcast %cst_48 : f32 to vector<10x10x16xf32>
    %c0_49 = arith.constant 0 : index
    %c0_50 = arith.constant 0 : index
    %c0_51 = arith.constant 0 : index
    %44 = vector.load %arg12[%c0_49, %c0_50, %c0_51] : memref<10x10x16xf32, #tpu.memory_space<vmem>>, vector<10x10x16xf32>
    tpu.vector_store %arg12[%c0_49, %c0_50, %c0_51], %43 {strides = array<i32>} : memref<10x10x16xf32, #tpu.memory_space<vmem>>, vector<10x10x16xf32>,
    %45 = vector.shape_cast %42 : vector<64x16xf32> to vector<8x8x16xf32>
    %c1_52 = arith.constant 1 : index
    %c1_53 = arith.constant 1 : index
    %c0_54 = arith.constant 0 : index
    %46 = vector.load %arg12[%c1_52, %c1_53, %c0_54] : memref<10x10x16xf32, #tpu.memory_space<vmem>>, vector<8x8x16xf32>
    tpu.vector_store %arg12[%c1_52, %c1_53, %c0_54], %45 {strides = array<i32>} : memref<10x10x16xf32, #tpu.memory_space<vmem>>, vector<8x8x16xf32>,
    %c0_55 = arith.constant 0 : index
    %c0_56 = arith.constant 0 : index
    %c0_57 = arith.constant 0 : index
    %47 = vector.load %arg12[%c0_55, %c0_56, %c0_57] : memref<10x10x16xf32, #tpu.memory_space<vmem>>, vector<8x8x16xf32>
    %c0_58 = arith.constant 0 : index
    %c1_59 = arith.constant 1 : index
    %c0_60 = arith.constant 0 : index
    %48 = vector.load %arg12[%c0_58, %c1_59, %c0_60] : memref<10x10x16xf32, #tpu.memory_space<vmem>>, vector<8x8x16xf32>
    %c0_61 = arith.constant 0 : index
    %c2_62 = arith.constant 2 : index
    %c0_63 = arith.constant 0 : index
    %49 = vector.load %arg12[%c0_61, %c2_62, %c0_63] : memref<10x10x16xf32, #tpu.memory_space<vmem>>, vector<8x8x16xf32>
    %c1_64 = arith.constant 1 : index
    %c0_65 = arith.constant 0 : index
    %c0_66 = arith.constant 0 : index
    %50 = vector.load %arg12[%c1_64, %c0_65, %c0_66] : memref<10x10x16xf32, #tpu.memory_space<vmem>>, vector<8x8x16xf32>
    %c1_67 = arith.constant 1 : index
    %c1_68 = arith.constant 1 : index
    %c0_69 = arith.constant 0 : index
    %51 = vector.load %arg12[%c1_67, %c1_68, %c0_69] : memref<10x10x16xf32, #tpu.memory_space<vmem>>, vector<8x8x16xf32>
    %c1_70 = arith.constant 1 : index
    %c2_71 = arith.constant 2 : index
    %c0_72 = arith.constant 0 : index
    %52 = vector.load %arg12[%c1_70, %c2_71, %c0_72] : memref<10x10x16xf32, #tpu.memory_space<vmem>>, vector<8x8x16xf32>
    %c2_73 = arith.constant 2 : index
    %c0_74 = arith.constant 0 : index
    %c0_75 = arith.constant 0 : index
    %53 = vector.load %arg12[%c2_73, %c0_74, %c0_75] : memref<10x10x16xf32, #tpu.memory_space<vmem>>, vector<8x8x16xf32>
    %c2_76 = arith.constant 2 : index
    %c1_77 = arith.constant 1 : index
    %c0_78 = arith.constant 0 : index
    %54 = vector.load %arg12[%c2_76, %c1_77, %c0_78] : memref<10x10x16xf32, #tpu.memory_space<vmem>>, vector<8x8x16xf32>
    %c2_79 = arith.constant 2 : index
    %c2_80 = arith.constant 2 : index
    %c0_81 = arith.constant 0 : index
    %55 = vector.load %arg12[%c2_79, %c2_80, %c0_81] : memref<10x10x16xf32, #tpu.memory_space<vmem>>, vector<8x8x16xf32>
    %56 = tpu.concatenate %47, %48, %49, %50, %51, %52, %53, %54, %55 in 2 : vector<8x8x16xf32>, vector<8x8x16xf32>, vector<8x8x16xf32>, vector<8x8x16xf32>, vector<8x8x16xf32>, vector<8x8x16xf32>, vector<8x8x16xf32>, vector<8x8x16xf32>, vector<8x8x16xf32> -> vector<8x8x144xf32>
    %57 = vector.shape_cast %56 : vector<8x8x144xf32> to vector<64x144xf32>
    %c0_82 = arith.constant 0 : index
    %c0_83 = arith.constant 0 : index
    %58 = vector.load %arg4[%c0_82, %c0_83] : memref<144x16xf32, #tpu.memory_space<vmem>>, vector<144x16xf32>
    %cst_84 = arith.constant dense<0.000000e+00> : vector<64x16xf32>
    %59 = tpu.matmul %57, %58, %cst_84 {dimension_numbers = #tpu.dot_dimension_numbers<[1], [0], [0], [1], [0, 0, 1, 1], [], []>} : vector<64x144xf32>, vector<144x16xf32>, vector<64x16xf32> -> vector<64x16xf32>
    %c0_85 = arith.constant 0 : index
    %c0_86 = arith.constant 0 : index
    %60 = vector.load %arg8[%c0_85, %c0_86] : memref<1x16xf32, #tpu.memory_space<vmem>>, vector<1x16xf32>
    %61 = vector.broadcast %60 : vector<1x16xf32> to vector<64x16xf32>
    %62 = arith.addf %59, %61 : vector<64x16xf32>
    %cst_87 = arith.constant 0.000000e+00 : f32
    %63 = vector.broadcast %cst_87 : f32 to vector<64x16xf32>
    %64 = arith.cmpf oge, %62, %63 : vector<64x16xf32>
    %cst_88 = arith.constant 2.000000e-01 : f32
    %65 = vector.broadcast %cst_88 : f32 to vector<64x16xf32>
    %66 = arith.mulf %65, %62 : vector<64x16xf32>
    %67 = arith.select %64, %62, %66 : vector<64x16xi1>, vector<64x16xf32>
    %cst_89 = arith.constant 0.000000e+00 : f32
    %68 = vector.broadcast %cst_89 : f32 to vector<10x10x16xf32>
    %c0_90 = arith.constant 0 : index
    %c0_91 = arith.constant 0 : index
    %c0_92 = arith.constant 0 : index
    %69 = vector.load %arg13[%c0_90, %c0_91, %c0_92] : memref<10x10x16xf32, #tpu.memory_space<vmem>>, vector<10x10x16xf32>
    tpu.vector_store %arg13[%c0_90, %c0_91, %c0_92], %68 {strides = array<i32>} : memref<10x10x16xf32, #tpu.memory_space<vmem>>, vector<10x10x16xf32>,
    %70 = vector.shape_cast %67 : vector<64x16xf32> to vector<8x8x16xf32>
    %c1_93 = arith.constant 1 : index
    %c1_94 = arith.constant 1 : index
    %c0_95 = arith.constant 0 : index
    %71 = vector.load %arg13[%c1_93, %c1_94, %c0_95] : memref<10x10x16xf32, #tpu.memory_space<vmem>>, vector<8x8x16xf32>
    tpu.vector_store %arg13[%c1_93, %c1_94, %c0_95], %70 {strides = array<i32>} : memref<10x10x16xf32, #tpu.memory_space<vmem>>, vector<8x8x16xf32>,
    %c0_96 = arith.constant 0 : index
    %c0_97 = arith.constant 0 : index
    %c0_98 = arith.constant 0 : index
    %72 = vector.load %arg13[%c0_96, %c0_97, %c0_98] : memref<10x10x16xf32, #tpu.memory_space<vmem>>, vector<8x8x16xf32>
    %c0_99 = arith.constant 0 : index
    %c1_100 = arith.constant 1 : index
    %c0_101 = arith.constant 0 : index
    %73 = vector.load %arg13[%c0_99, %c1_100, %c0_101] : memref<10x10x16xf32, #tpu.memory_space<vmem>>, vector<8x8x16xf32>
    %c0_102 = arith.constant 0 : index
    %c2_103 = arith.constant 2 : index
    %c0_104 = arith.constant 0 : index
    %74 = vector.load %arg13[%c0_102, %c2_103, %c0_104] : memref<10x10x16xf32, #tpu.memory_space<vmem>>, vector<8x8x16xf32>
    %c1_105 = arith.constant 1 : index
    %c0_106 = arith.constant 0 : index
    %c0_107 = arith.constant 0 : index
    %75 = vector.load %arg13[%c1_105, %c0_106, %c0_107] : memref<10x10x16xf32, #tpu.memory_space<vmem>>, vector<8x8x16xf32>
    %c1_108 = arith.constant 1 : index
    %c1_109 = arith.constant 1 : index
    %c0_110 = arith.constant 0 : index
    %76 = vector.load %arg13[%c1_108, %c1_109, %c0_110] : memref<10x10x16xf32, #tpu.memory_space<vmem>>, vector<8x8x16xf32>
    %c1_111 = arith.constant 1 : index
    %c2_112 = arith.constant 2 : index
    %c0_113 = arith.constant 0 : index
    %77 = vector.load %arg13[%c1_111, %c2_112, %c0_113] : memref<10x10x16xf32, #tpu.memory_space<vmem>>, vector<8x8x16xf32>
    %c2_114 = arith.constant 2 : index
    %c0_115 = arith.constant 0 : index
    %c0_116 = arith.constant 0 : index
    %78 = vector.load %arg13[%c2_114, %c0_115, %c0_116] : memref<10x10x16xf32, #tpu.memory_space<vmem>>, vector<8x8x16xf32>
    %c2_117 = arith.constant 2 : index
    %c1_118 = arith.constant 1 : index
    %c0_119 = arith.constant 0 : index
    %79 = vector.load %arg13[%c2_117, %c1_118, %c0_119] : memref<10x10x16xf32, #tpu.memory_space<vmem>>, vector<8x8x16xf32>
    %c2_120 = arith.constant 2 : index
    %c2_121 = arith.constant 2 : index
    %c0_122 = arith.constant 0 : index
    %80 = vector.load %arg13[%c2_120, %c2_121, %c0_122] : memref<10x10x16xf32, #tpu.memory_space<vmem>>, vector<8x8x16xf32>
    %81 = tpu.concatenate %72, %73, %74, %75, %76, %77, %78, %79, %80 in 2 : vector<8x8x16xf32>, vector<8x8x16xf32>, vector<8x8x16xf32>, vector<8x8x16xf32>, vector<8x8x16xf32>, vector<8x8x16xf32>, vector<8x8x16xf32>, vector<8x8x16xf32>, vector<8x8x16xf32> -> vector<8x8x144xf32>
    %82 = vector.shape_cast %81 : vector<8x8x144xf32> to vector<64x144xf32>
    %c0_123 = arith.constant 0 : index
    %c0_124 = arith.constant 0 : index
    %83 = vector.load %arg5[%c0_123, %c0_124] : memref<144x16xf32, #tpu.memory_space<vmem>>, vector<144x16xf32>
    %cst_125 = arith.constant dense<0.000000e+00> : vector<64x16xf32>
    %84 = tpu.matmul %82, %83, %cst_125 {dimension_numbers = #tpu.dot_dimension_numbers<[1], [0], [0], [1], [0, 0, 1, 1], [], []>} : vector<64x144xf32>, vector<144x16xf32>, vector<64x16xf32> -> vector<64x16xf32>
    %c0_126 = arith.constant 0 : index
    %c0_127 = arith.constant 0 : index
    %85 = vector.load %arg9[%c0_126, %c0_127] : memref<1x16xf32, #tpu.memory_space<vmem>>, vector<1x16xf32>
    %86 = vector.broadcast %85 : vector<1x16xf32> to vector<64x16xf32>
    %87 = arith.addf %84, %86 : vector<64x16xf32>
    %c0_128 = arith.constant 0 : index
    %c0_129 = arith.constant 0 : index
    %c0_130 = arith.constant 0 : index
    %88 = vector.load %arg10[%c0_128, %c0_129, %c0_130] : memref<1x64x16xf32, #tpu.memory_space<vmem>>, vector<1x64x16xf32>
    %89 = vector.shape_cast %88 : vector<1x64x16xf32> to vector<64x16xf32>
    %90 = vector.shape_cast %87 : vector<64x16xf32> to vector<1x64x16xf32>
    tpu.vector_store %arg10[%c0_128, %c0_129, %c0_130], %90 {strides = array<i32>} : memref<1x64x16xf32, #tpu.memory_space<vmem>>, vector<1x64x16xf32>,
    return
  }
  func.func @transform_0(%arg0: i32) -> (i32, i32, i32, i32) {
    %c0_i32 = arith.constant 0 : i32
    %c0_i32_0 = arith.constant 0 : i32
    %c0_i32_1 = arith.constant 0 : i32
    %c0_i32_2 = arith.constant 0 : i32
    return %arg0, %c0_i32, %c0_i32_0, %c0_i32_1 : i32, i32, i32, i32
  }
  func.func @transform_1(%arg0: i32) -> (i32, i32) {
    %c0_i32 = arith.constant 0 : i32
    %c0_i32_0 = arith.constant 0 : i32
    %c0_i32_1 = arith.constant 0 : i32
    return %c0_i32, %c0_i32_0 : i32, i32
  }
  func.func @transform_2(%arg0: i32) -> (i32, i32) {
    %c0_i32 = arith.constant 0 : i32
    %c0_i32_0 = arith.constant 0 : i32
    %c0_i32_1 = arith.constant 0 : i32
    return %c0_i32, %c0_i32_0 : i32, i32
  }
  func.func @transform_3(%arg0: i32) -> (i32, i32) {
    %c0_i32 = arith.constant 0 : i32
    %c0_i32_0 = arith.constant 0 : i32
    %c0_i32_1 = arith.constant 0 : i32
    return %c0_i32, %c0_i32_0 : i32, i32
  }
  func.func @transform_4(%arg0: i32) -> (i32, i32) {
    %c0_i32 = arith.constant 0 : i32
    %c0_i32_0 = arith.constant 0 : i32
    %c0_i32_1 = arith.constant 0 : i32
    return %c0_i32, %c0_i32_0 : i32, i32
  }
  func.func @transform_5(%arg0: i32) -> (i32, i32) {
    %c0_i32 = arith.constant 0 : i32
    %c0_i32_0 = arith.constant 0 : i32
    %c0_i32_1 = arith.constant 0 : i32
    return %c0_i32, %c0_i32_0 : i32, i32
  }
  func.func @transform_6(%arg0: i32) -> (i32, i32) {
    %c0_i32 = arith.constant 0 : i32
    %c0_i32_0 = arith.constant 0 : i32
    %c0_i32_1 = arith.constant 0 : i32
    return %c0_i32, %c0_i32_0 : i32, i32
  }
  func.func @transform_7(%arg0: i32) -> (i32, i32) {
    %c0_i32 = arith.constant 0 : i32
    %c0_i32_0 = arith.constant 0 : i32
    %c0_i32_1 = arith.constant 0 : i32
    return %c0_i32, %c0_i32_0 : i32, i32
  }
  func.func @transform_8(%arg0: i32) -> (i32, i32) {
    %c0_i32 = arith.constant 0 : i32
    %c0_i32_0 = arith.constant 0 : i32
    %c0_i32_1 = arith.constant 0 : i32
    return %c0_i32, %c0_i32_0 : i32, i32
  }
  func.func @transform_9(%arg0: i32) -> (i32, i32, i32) {
    %c0_i32 = arith.constant 0 : i32
    %c0_i32_0 = arith.constant 0 : i32
    %c0_i32_1 = arith.constant 0 : i32
    return %arg0, %c0_i32, %c0_i32_0 : i32, i32, i32
  }
}

</mosaic_0001>

<llo_original>
// kernel: tile.8
$region0: #{tile.8}
  #allocation0 [shape = 's32[1]{0}', space=sflag, size = 0x4, scoped, tag = 'scoped memory for tile.8']
  %s0 = inlined_call_operand.vmem [shape: f32[4], index: 0, kind: input, shape index: {}]
  %s1 = inlined_call_operand.vmem [shape: f32[4,4], index: 1, kind: output, shape index: {}]
  // Predicated region
  $region2: #{tile.8} parent=0 // pred_check
    _
  $region3: #{tile.8} parent=0 // pred_check_branch
    %3 = sbr.rel (0) target = $region5
  $region4: #{tile.8} parent=0 // pred_region
    _
  $region5: #{tile.8} parent=0 // pred_fallthru
    _
  %v4 = vld [vmem:[%s0] ss:$0 sm:$0xff]
  %5 = vst [vmem:[%s1] sm:$0xf] %v4

// kernel: tile.9
$region0: #{tile.9}
  %s0 = inlined_call_operand.vmem [shape: f32[4,4], index: 0, kind: input, shape index: {}]
  %s1 = inlined_call_operand.vmem [shape: f32[1,16], index: 1, kind: output, shape index: {}]
  $region1: #{tile.9} parent=0
    #allocation0 [shape = 'u8[4096]{0}', space=vmem, size = 0x1000, scoped, tag = 'scoped mem for output reshape']
    #allocation1 [shape = 'u8[4096]{0}', space=vmem, size = 0x1000, scoped, tag = 'scoped mem for input reshape']
    %s3 = sshll.u32 1, 4
    %s4 = ssub.s32 %s3, 1
    %v5 = vld [vmem:[%s0] sm:%s4]
    %6 = vst [vmem:[#allocation1] sm:%s4] %v5
    %v7 = vld [vmem:[#allocation1] sm:$0x1]
    %vm8 = vcmask 31744
    %9 = vst.msk [vmem:[#allocation0] sm:$0x1] %vm8, %v7
    %s10 = scalar_lea.vmem [#allocation1], 3
    %v11 = vld [vmem:[%s10] sm:$0x1]
    %12 = vrot.lane.b32.xlu0 %v11, 12
    %v13 = vpop.permute.xlu0 %12
    %vm14 = vcmask 130144
    %15 = vst.msk [vmem:[#allocation0] sm:$0x1] %vm14, %v13
    %s16 = scalar_lea.vmem [#allocation1], 2
    %v17 = vld [vmem:[%s16] sm:$0x1]
    %18 = vrot.lane.b32.xlu0 %v17, 8
    %v19 = vpop.permute.xlu0 %18
    %vm20 = vcmask 97344
    %21 = vst.msk [vmem:[#allocation0] sm:$0x1] %vm20, %v19
    %s22 = scalar_lea.vmem [#allocation1], 1
    %v23 = vld [vmem:[%s22] sm:$0x1]
    %24 = vrot.lane.b32.xlu0 %v23, 4
    %v25 = vpop.permute.xlu0 %24
    %vm26 = vcmask 64544
    %27 = vst.msk [vmem:[#allocation0] sm:$0x1] %vm26, %v25
    %s29 = sshll.u32 1, 1
    %s30 = ssub.s32 %s29, 1
    %v32 = vld [vmem:[#allocation0] sm:%s30]
    %s33 = sshll.u32 1, 1
    %s34 = ssub.s32 %s33, 1
    %35 = vst [vmem:[%s1] sm:%s34] %v32

// kernel: head_forward.1
$region0: #{head_forward.1}
  #allocation0 [shape = 'u32[]', space=smem, size = 0x4, offset = 0x4, fixed_abs, tag = 'smem constant byte address 0x4 - core index']
  #allocation1 [shape = 'u32[144,128]{1,0:T(1,128)}', space=vmem, size = 0x12000, scoped, tag = 'internal scratch']
  #allocation2 [shape = 'f32[10,10,16]{2,1,0:T(8,128)}', space=vmem, size = 0x14000, scoped, tag = 'scratch operand']
  #allocation3 [shape = 'f32[10,10,16]{2,1,0:T(8,128)}', space=vmem, size = 0x14000, scoped, tag = 'scratch operand']
  #allocation4 [shape = 'f32[10,10,16]{2,1,0:T(8,128)}', space=vmem, size = 0x14000, scoped, tag = 'scratch operand']
  %s0 = inlined_call_operand.vmem [shape: f32[2,9,9,12], index: 0, kind: input, shape index: {}]
  %s1 = inlined_call_operand.vmem [shape: f32[48,16], index: 1, kind: input, shape index: {}]
  %s2 = inlined_call_operand.vmem [shape: f32[144,16], index: 2, kind: input, shape index: {}]
  %s3 = inlined_call_operand.vmem [shape: f32[144,16], index: 3, kind: input, shape index: {}]
  %s4 = inlined_call_operand.vmem [shape: f32[144,16], index: 4, kind: input, shape index: {}]
  %s5 = inlined_call_operand.vmem [shape: f32[1,16], index: 5, kind: input, shape index: {}]
  %s6 = inlined_call_operand.vmem [shape: f32[1,16], index: 6, kind: input, shape index: {}]
  %s7 = inlined_call_operand.vmem [shape: f32[1,16], index: 7, kind: input, shape index: {}]
  %s8 = inlined_call_operand.vmem [shape: f32[1,16], index: 8, kind: input, shape index: {}]
  %s9 = inlined_call_operand.vmem [shape: f32[2,64,16], index: 9, kind: output, shape index: {}]
  %s10 = sld [smem:[#allocation0]]
  $region69: #{head_forward.1} parent=0
    _
  %s12 = ssub.s32 1, %s10
  %s13 = scalar_select 0, %s12, %s10
  loop: start=0, step=1, limit=4
  $region2: #{head_forward.1} parent=0 // loop_pre_header
    _
  $region3: #{head_forward.1} parent=0 // loop_header
    %s15 = sphi 0, %s19
    %p16 = scmp.ge.s32.totalorder %s15, 4
    %s25 = sphi 0, %s27
    %s28 = sphi 0, %s25
    %s29 = sphi 0, %s28
    %s45 = sphi 0, %s29
    %s49 = sphi 0, %s49
    %s51 = sphi 0, %s49
    %s52 = sphi 0, %s51
    %s66 = sphi 0, %s52
    %s70 = sphi 0, %s70
    %s72 = sphi 0, %s70
    %s73 = sphi 0, %s72
    %s87 = sphi 0, %s73
    %s91 = sphi 0, %s91
    %s93 = sphi 0, %s91
    %s94 = sphi 0, %s93
    %s108 = sphi 0, %s94
    %s112 = sphi 0, %s112
    %s114 = sphi 0, %s112
    %s115 = sphi 0, %s114
    %s129 = sphi 0, %s115
    %s133 = sphi 0, %s133
    %s135 = sphi 0, %s133
    %s136 = sphi 0, %s135
    %s150 = sphi 0, %s136
    %s154 = sphi 0, %s154
    %s156 = sphi 0, %s154
    %s157 = sphi 0, %s156
    %s171 = sphi 0, %s157
    %s175 = sphi 0, %s175
    %s177 = sphi 0, %s175
    %s178 = sphi 0, %s177
    %s192 = sphi 0, %s178
    %s196 = sphi 0, %s196
    %s198 = sphi 0, %s196
    %s199 = sphi 0, %s198
    %s213 = sphi 0, %s199
    %s219 = sphi 0, %s221
    %s222 = sphi 0, %s219
    %s223 = sphi 0, %s222
    %s239 = sphi 0, %s223
  $region4: #{head_forward.1} parent=0 // loop_header_branch
    %18 = sbr.rel (%p16) target = $region8
  $region5: #{head_forward.1} parent=0 // loop_body
    %s20 = ssub.s32 %s15, 1
    %s21 = ssub.s32 %s15, 2
    %s22 = sadd.s32 %s15, 1
    %s23 = ssub.s32 %s15, %s22
    %p24 = scmp.eq.s32.totalorder %s23, 0
    %s26 = sadd.s32 %s25, 1
    %s27 = scalar_select %p24, %s25, %s26
    %p30 = pneg %p24
    %p31 = scmp.eq.s32.totalorder %s15, 1
    %p32 = por %p30, %p31
    %p33 = scmp.ne.s32.totalorder %s25, %s28
    %p34 = scmp.eq.s32.totalorder %s15, 0
    %p35 = por %p33, %p34
    %p36 = scmp.ne.s32.totalorder %s25, %s28
    %p37 = scmp.eq.s32.totalorder %s20, 1
    %p38 = por %p36, %p37
    %p39 = scmp.ne.s32.totalorder %s28, %s29
    %p40 = scmp.eq.s32.totalorder %s20, 0
    %p41 = por %p39, %p40
    %p42 = scmp.ne.s32.totalorder %s28, %s29
    %p43 = scmp.eq.s32.totalorder %s21, 1
    %p44 = por %p42, %p43
    %p46 = scmp.ne.s32.totalorder %s29, %s45
    %p47 = scmp.eq.s32.totalorder %s21, 0
    %p48 = por %p46, %p47
    %s50 = sadd.s32 %s49, 1
    %p53 = scmp.eq.s32.totalorder %s15, 1
    %p54 = scmp.ne.s32.totalorder %s49, %s51
    %p55 = scmp.eq.s32.totalorder %s15, 0
    %p56 = por %p54, %p55
    %p57 = scmp.ne.s32.totalorder %s49, %s51
    %p58 = scmp.eq.s32.totalorder %s20, 1
    %p59 = por %p57, %p58
    %p60 = scmp.ne.s32.totalorder %s51, %s52
    %p61 = scmp.eq.s32.totalorder %s20, 0
    %p62 = por %p60, %p61
    %p63 = scmp.ne.s32.totalorder %s51, %s52
    %p64 = scmp.eq.s32.totalorder %s21, 1
    %p65 = por %p63, %p64
    %p67 = scmp.ne.s32.totalorder %s52, %s66
    %p68 = scmp.eq.s32.totalorder %s21, 0
    %p69 = por %p67, %p68
    %s71 = sadd.s32 %s70, 1
    %p74 = scmp.eq.s32.totalorder %s15, 1
    %p75 = scmp.ne.s32.totalorder %s70, %s72
    %p76 = scmp.eq.s32.totalorder %s15, 0
    %p77 = por %p75, %p76
    %p78 = scmp.ne.s32.totalorder %s70, %s72
    %p79 = scmp.eq.s32.totalorder %s20, 1
    %p80 = por %p78, %p79
    %p81 = scmp.ne.s32.totalorder %s72, %s73
    %p82 = scmp.eq.s32.totalorder %s20, 0
    %p83 = por %p81, %p82
    %p84 = scmp.ne.s32.totalorder %s72, %s73
    %p85 = scmp.eq.s32.totalorder %s21, 1
    %p86 = por %p84, %p85
    %p88 = scmp.ne.s32.totalorder %s73, %s87
    %p89 = scmp.eq.s32.totalorder %s21, 0
    %p90 = por %p88, %p89
    %s92 = sadd.s32 %s91, 1
    %p95 = scmp.eq.s32.totalorder %s15, 1
    %p96 = scmp.ne.s32.totalorder %s91, %s93
    %p97 = scmp.eq.s32.totalorder %s15, 0
    %p98 = por %p96, %p97
    %p99 = scmp.ne.s32.totalorder %s91, %s93
    %p100 = scmp.eq.s32.totalorder %s20, 1
    %p101 = por %p99, %p100
    %p102 = scmp.ne.s32.totalorder %s93, %s94
    %p103 = scmp.eq.s32.totalorder %s20, 0
    %p104 = por %p102, %p103
    %p105 = scmp.ne.s32.totalorder %s93, %s94
    %p106 = scmp.eq.s32.totalorder %s21, 1
    %p107 = por %p105, %p106
    %p109 = scmp.ne.s32.totalorder %s94, %s108
    %p110 = scmp.eq.s32.totalorder %s21, 0
    %p111 = por %p109, %p110
    %s113 = sadd.s32 %s112, 1
    %p116 = scmp.eq.s32.totalorder %s15, 1
    %p117 = scmp.ne.s32.totalorder %s112, %s114
    %p118 = scmp.eq.s32.totalorder %s15, 0
    %p119 = por %p117, %p118
    %p120 = scmp.ne.s32.totalorder %s112, %s114
    %p121 = scmp.eq.s32.totalorder %s20, 1
    %p122 = por %p120, %p121
    %p123 = scmp.ne.s32.totalorder %s114, %s115
    %p124 = scmp.eq.s32.totalorder %s20, 0
    %p125 = por %p123, %p124
    %p126 = scmp.ne.s32.totalorder %s114, %s115
    %p127 = scmp.eq.s32.totalorder %s21, 1
    %p128 = por %p126, %p127
    %p130 = scmp.ne.s32.totalorder %s115, %s129
    %p131 = scmp.eq.s32.totalorder %s21, 0
    %p132 = por %p130, %p131
    %s134 = sadd.s32 %s133, 1
    %p137 = scmp.eq.s32.totalorder %s15, 1
    %p138 = scmp.ne.s32.totalorder %s133, %s135
    %p139 = scmp.eq.s32.totalorder %s15, 0
    %p140 = por %p138, %p139
    %p141 = scmp.ne.s32.totalorder %s133, %s135
    %p142 = scmp.eq.s32.totalorder %s20, 1
    %p143 = por %p141, %p142
    %p144 = scmp.ne.s32.totalorder %s135, %s136
    %p145 = scmp.eq.s32.totalorder %s20, 0
    %p146 = por %p144, %p145
    %p147 = scmp.ne.s32.totalorder %s135, %s136
    %p148 = scmp.eq.s32.totalorder %s21, 1
    %p149 = por %p147, %p148
    %p151 = scmp.ne.s32.totalorder %s136, %s150
    %p152 = scmp.eq.s32.totalorder %s21, 0
    %p153 = por %p151, %p152
    %s155 = sadd.s32 %s154, 1
    %p158 = scmp.eq.s32.totalorder %s15, 1
    %p159 = scmp.ne.s32.totalorder %s154, %s156
    %p160 = scmp.eq.s32.totalorder %s15, 0
    %p161 = por %p159, %p160
    %p162 = scmp.ne.s32.totalorder %s154, %s156
    %p163 = scmp.eq.s32.totalorder %s20, 1
    %p164 = por %p162, %p163
    %p165 = scmp.ne.s32.totalorder %s156, %s157
    %p166 = scmp.eq.s32.totalorder %s20, 0
    %p167 = por %p165, %p166
    %p168 = scmp.ne.s32.totalorder %s156, %s157
    %p169 = scmp.eq.s32.totalorder %s21, 1
    %p170 = por %p168, %p169
    %p172 = scmp.ne.s32.totalorder %s157, %s171
    %p173 = scmp.eq.s32.totalorder %s21, 0
    %p174 = por %p172, %p173
    %s176 = sadd.s32 %s175, 1
    %p179 = scmp.eq.s32.totalorder %s15, 1
    %p180 = scmp.ne.s32.totalorder %s175, %s177
    %p181 = scmp.eq.s32.totalorder %s15, 0
    %p182 = por %p180, %p181
    %p183 = scmp.ne.s32.totalorder %s175, %s177
    %p184 = scmp.eq.s32.totalorder %s20, 1
    %p185 = por %p183, %p184
    %p186 = scmp.ne.s32.totalorder %s177, %s178
    %p187 = scmp.eq.s32.totalorder %s20, 0
    %p188 = por %p186, %p187
    %p189 = scmp.ne.s32.totalorder %s177, %s178
    %p190 = scmp.eq.s32.totalorder %s21, 1
    %p191 = por %p189, %p190
    %p193 = scmp.ne.s32.totalorder %s178, %s192
    %p194 = scmp.eq.s32.totalorder %s21, 0
    %p195 = por %p193, %p194
    %s197 = sadd.s32 %s196, 1
    %p200 = scmp.eq.s32.totalorder %s15, 1
    %p201 = scmp.ne.s32.totalorder %s196, %s198
    %p202 = scmp.eq.s32.totalorder %s15, 0
    %p203 = por %p201, %p202
    %p204 = scmp.ne.s32.totalorder %s196, %s198
    %p205 = scmp.eq.s32.totalorder %s20, 1
    %p206 = por %p204, %p205
    %p207 = scmp.ne.s32.totalorder %s198, %s199
    %p208 = scmp.eq.s32.totalorder %s20, 0
    %p209 = por %p207, %p208
    %p210 = scmp.ne.s32.totalorder %s198, %s199
    %p211 = scmp.eq.s32.totalorder %s21, 1
    %p212 = por %p210, %p211
    %p214 = scmp.ne.s32.totalorder %s199, %s213
    %p215 = scmp.eq.s32.totalorder %s21, 0
    %p216 = por %p214, %p215
    %s217 = ssub.s32 %s15, %s22
    %p218 = scmp.eq.s32.totalorder %s217, 0
    %s220 = sadd.s32 %s219, 1
    %s221 = scalar_select %p218, %s219, %s220
    %p224 = pneg %p218
    %p225 = scmp.eq.s32.totalorder %s15, 1
    %p226 = por %p224, %p225
    %p227 = scmp.ne.s32.totalorder %s219, %s222
    %p228 = scmp.eq.s32.totalorder %s15, 0
    %p229 = por %p227, %p228
    %p230 = scmp.ne.s32.totalorder %s219, %s222
    %p231 = scmp.eq.s32.totalorder %s20, 1
    %p232 = por %p230, %p231
    %p233 = scmp.ne.s32.totalorder %s222, %s223
    %p234 = scmp.eq.s32.totalorder %s20, 0
    %p235 = por %p233, %p234
    %p236 = scmp.ne.s32.totalorder %s222, %s223
    %p237 = scmp.eq.s32.totalorder %s21, 1
    %p238 = por %p236, %p237
    %p240 = scmp.ne.s32.totalorder %s223, %s239
    %p241 = scmp.eq.s32.totalorder %s21, 0
    %p242 = por %p240, %p241
    %p243 = scmp.le.s32.totalorder 1, %s15
    %p244 = scmp.lt.s32.totalorder %s15, 3
    %p245 = pnand %p243, %p244
    %p246 = pneg %p245
    // Predicated region
    $region9: #{head_forward.1} parent=5 // pred_check
      _
    $region10: #{head_forward.1} parent=5 // pred_check_branch
      %248 = sbr.rel (%p245) target = $region12
    $region11: #{head_forward.1} parent=5 // pred_region
      %s249 = ssub.s32 %s15, 1
      // Predicated region
      $region13: #{head_forward.1} parent=11 // pred_check
        %p250 = pneg %p62
      $region14: #{head_forward.1} parent=11 // pred_check_branch
        %252 = sbr.rel (%p250) target = $region16
      $region15: #{head_forward.1} parent=11 // pred_region
        _
      $region16: #{head_forward.1} parent=11 // pred_fallthru
        _
      // Predicated region
      $region17: #{head_forward.1} parent=11 // pred_check
        %p253 = pneg %p83
      $region18: #{head_forward.1} parent=11 // pred_check_branch
        %255 = sbr.rel (%p253) target = $region20
      $region19: #{head_forward.1} parent=11 // pred_region
        _
      $region20: #{head_forward.1} parent=11 // pred_fallthru
        _
      // Predicated region
      $region21: #{head_forward.1} parent=11 // pred_check
        %p256 = pneg %p104
      $region22: #{head_forward.1} parent=11 // pred_check_branch
        %258 = sbr.rel (%p256) target = $region24
      $region23: #{head_forward.1} parent=11 // pred_region
        _
      $region24: #{head_forward.1} parent=11 // pred_fallthru
        _
      // Predicated region
      $region25: #{head_forward.1} parent=11 // pred_check
        %p259 = pneg %p125
      $region26: #{head_forward.1} parent=11 // pred_check_branch
        %261 = sbr.rel (%p259) target = $region28
      $region27: #{head_forward.1} parent=11 // pred_region
        _
      $region28: #{head_forward.1} parent=11 // pred_fallthru
        _
      // Predicated region
      $region29: #{head_forward.1} parent=11 // pred_check
        %p262 = pneg %p146
      $region30: #{head_forward.1} parent=11 // pred_check_branch
        %264 = sbr.rel (%p262) target = $region32
      $region31: #{head_forward.1} parent=11 // pred_region
        _
      $region32: #{head_forward.1} parent=11 // pred_fallthru
        _
      // Predicated region
      $region33: #{head_forward.1} parent=11 // pred_check
        %p265 = pneg %p167
      $region34: #{head_forward.1} parent=11 // pred_check_branch
        %267 = sbr.rel (%p265) target = $region36
      $region35: #{head_forward.1} parent=11 // pred_region
        _
      $region36: #{head_forward.1} parent=11 // pred_fallthru
        _
      // Predicated region
      $region37: #{head_forward.1} parent=11 // pred_check
        %p268 = pneg %p188
      $region38: #{head_forward.1} parent=11 // pred_check_branch
        %270 = sbr.rel (%p268) target = $region40
      $region39: #{head_forward.1} parent=11 // pred_region
        _
      $region40: #{head_forward.1} parent=11 // pred_fallthru
        _
      // Predicated region
      $region41: #{head_forward.1} parent=11 // pred_check
        %p271 = pneg %p209
      $region42: #{head_forward.1} parent=11 // pred_check_branch
        %273 = sbr.rel (%p271) target = $region44
      $region43: #{head_forward.1} parent=11 // pred_region
        _
      $region44: #{head_forward.1} parent=11 // pred_fallthru
        _
    $region12: #{head_forward.1} parent=5 // pred_fallthru
      _
    %p274 = scmp.lt.s32.totalorder %s15, 2
    // Predicated region
    $region45: #{head_forward.1} parent=5 // pred_check
      %p275 = pneg %p274
    $region46: #{head_forward.1} parent=5 // pred_check_branch
      %277 = sbr.rel (%p275) target = $region48
    $region47: #{head_forward.1} parent=5 // pred_region
      // Predicated region
      $region49: #{head_forward.1} parent=47 // pred_check
        %p278 = pneg %p35
      $region50: #{head_forward.1} parent=47 // pred_check_branch
        %280 = sbr.rel (%p278) target = $region52
      $region51: #{head_forward.1} parent=47 // pred_region
        %p281 = scmp.lt.s32.totalorder %s15, 1
        %s282 = scalar_select %p281, %s15, 1
        %s283 = smul.addr %s282, 18
        %s284 = smul.addr %s283, 8
        %s285 = scalar_lea.vmem %s0, %s284
      $region52: #{head_forward.1} parent=47 // pred_fallthru
        _
    $region48: #{head_forward.1} parent=5 // pred_fallthru
      _
    %p286 = scmp.le.s32.totalorder 1, %s15
    %p287 = scmp.lt.s32.totalorder %s15, 3
    %p288 = pnand %p286, %p287
    %p289 = pneg %p288
    // Predicated region
    $region53: #{head_forward.1} parent=5 // pred_check
      _
    $region54: #{head_forward.1} parent=5 // pred_check_branch
      %291 = sbr.rel (%p288) target = $region56
    $region55: #{head_forward.1} parent=5 // pred_region
      %s292 = ssub.s32 %s15, 1
      %p293 = scmp.lt.s32.totalorder %s20, 1
      %s294 = scalar_select %p293, %s20, 1
      %s295 = smul.addr %s294, 18
      %s296 = smul.addr %s295, 8
      %s297 = scalar_lea.vmem %s0, %s296
      %p298 = pneg %p41
      %p299 = pneg %p38
      %p300 = pneg %p62
      %p301 = pneg %p59
      %p302 = pneg %p83
      %p303 = pneg %p80
      %p304 = pneg %p104
      %p305 = pneg %p101
      %p306 = pneg %p125
      %p307 = pneg %p122
      %p308 = pneg %p146
      %p309 = pneg %p143
      %p310 = pneg %p167
      %p311 = pneg %p164
      %p312 = pneg %p188
      %p313 = pneg %p185
      %p314 = pneg %p209
      %p315 = pneg %p206
      %p316 = pneg %p235
      %p317 = pneg %p232
      %p318 = scmp.lt.s32.totalorder %s20, 1
      %s319 = scalar_select %p318, %s20, 1
      %s320 = smul.addr %s319, 8
      %s321 = smul.addr %s320, 8
      %s322 = scalar_lea.vmem %s9, %s321
      %p323 = scmp.lt.s32.totalorder %s20, 1
      %s324 = scalar_select %p323, %s20, 1
      %s325 = smul.addr %s324, 18
      %s326 = smul.addr %s325, 8
      %s327 = scalar_lea.vmem %s0, %s326
      %p328 = scmp.lt.s32.totalorder %s20, 1
      %s329 = scalar_select %p328, %s20, 1
      %s330 = smul.addr %s329, 8
      %s331 = smul.addr %s330, 8
      %s332 = scalar_lea.vmem %s9, %s331
      %v333 = vld [vmem:[%s327] sm:$0xff]
      %v334 = vld [vmem:[%s327 + $0x8] sm:$0x1]
      %v335 = vld [vmem:[%s327 + $0x10] sm:$0xff]
      %v336 = vld [vmem:[%s327 + $0x18] sm:$0x1]
      %v337 = vld [vmem:[%s327 + $0x20] sm:$0xff]
      %v338 = vld [vmem:[%s327 + $0x28] sm:$0x1]
      %v339 = vld [vmem:[%s327 + $0x30] sm:$0xff]
      %v340 = vld [vmem:[%s327 + $0x38] sm:$0x1]
      %v341 = vld [vmem:[%s327 + $0x40] sm:$0xff]
      %v342 = vld [vmem:[%s327 + $0x48] sm:$0x1]
      %v343 = vld [vmem:[%s327 + $0x50] sm:$0xff]
      %v344 = vld [vmem:[%s327 + $0x58] sm:$0x1]
      %v345 = vld [vmem:[%s327 + $0x60] sm:$0xff]
      %v346 = vld [vmem:[%s327 + $0x68] sm:$0x1]
      %v347 = vld [vmem:[%s327 + $0x70] sm:$0xff]
      %v348 = vld [vmem:[%s327 + $0x78] sm:$0x1]
      %v349 = vld [vmem:[%s327 + $0x80] sm:$0xff]
      %v350 = vld [vmem:[%s327 + $0x88] sm:$0x1]
      %vm367 = vcmask 1046528
      %v368 = vrot.slane %v333, 1
      %v369 = vrot.slane %v334, 1
      %v370 = vsel %vm367, %v368, %v369
      %v371 = vrot.slane %v335, 1
      %v372 = vrot.slane %v336, 1
      %v373 = vsel %vm367, %v371, %v372
      %v374 = vrot.slane %v337, 1
      %v375 = vrot.slane %v338, 1
      %v376 = vsel %vm367, %v374, %v375
      %v377 = vrot.slane %v339, 1
      %v378 = vrot.slane %v340, 1
      %v379 = vsel %vm367, %v377, %v378
      %v380 = vrot.slane %v341, 1
      %v381 = vrot.slane %v342, 1
      %v382 = vsel %vm367, %v380, %v381
      %v383 = vrot.slane %v343, 1
      %v384 = vrot.slane %v344, 1
      %v385 = vsel %vm367, %v383, %v384
      %v386 = vrot.slane %v345, 1
      %v387 = vrot.slane %v346, 1
      %v388 = vsel %vm367, %v386, %v387
      %v389 = vrot.slane %v347, 1
      %v390 = vrot.slane %v348, 1
      %v391 = vsel %vm367, %v389, %v390
      %392 = vrot.lane.b32.xlu0 %v370, 12
      %v393 = vpop.permute.xlu0 %392
      %394 = vrot.lane.b32.xlu0 %v373, 12
      %v395 = vpop.permute.xlu0 %394
      %396 = vrot.lane.b32.xlu0 %v376, 12
      %v397 = vpop.permute.xlu0 %396
      %398 = vrot.lane.b32.xlu0 %v379, 12
      %v399 = vpop.permute.xlu0 %398
      %400 = vrot.lane.b32.xlu0 %v382, 12
      %v401 = vpop.permute.xlu0 %400
      %402 = vrot.lane.b32.xlu0 %v385, 12
      %v403 = vpop.permute.xlu0 %402
      %404 = vrot.lane.b32.xlu0 %v388, 12
      %v405 = vpop.permute.xlu0 %404
      %406 = vrot.lane.b32.xlu0 %v391, 12
      %v407 = vpop.permute.xlu0 %406
      %417 = vrot.lane.b32.xlu0 %v335, 24
      %v418 = vpop.permute.xlu0 %417
      %419 = vrot.lane.b32.xlu0 %v337, 24
      %v420 = vpop.permute.xlu0 %419
      %421 = vrot.lane.b32.xlu0 %v339, 24
      %v422 = vpop.permute.xlu0 %421
      %423 = vrot.lane.b32.xlu0 %v341, 24
      %v424 = vpop.permute.xlu0 %423
      %425 = vrot.lane.b32.xlu0 %v343, 24
      %v426 = vpop.permute.xlu0 %425
      %427 = vrot.lane.b32.xlu0 %v345, 24
      %v428 = vpop.permute.xlu0 %427
      %429 = vrot.lane.b32.xlu0 %v347, 24
      %v430 = vpop.permute.xlu0 %429
      %431 = vrot.lane.b32.xlu0 %v349, 24
      %v432 = vpop.permute.xlu0 %431
      %v442 = vrot.slane %v349, 1
      %v443 = vrot.slane %v350, 1
      %v444 = vsel %vm367, %v442, %v443
      %445 = vrot.lane.b32.xlu0 %v373, 36
      %v446 = vpop.permute.xlu0 %445
      %447 = vrot.lane.b32.xlu0 %v376, 36
      %v448 = vpop.permute.xlu0 %447
      %449 = vrot.lane.b32.xlu0 %v379, 36
      %v450 = vpop.permute.xlu0 %449
      %451 = vrot.lane.b32.xlu0 %v382, 36
      %v452 = vpop.permute.xlu0 %451
      %453 = vrot.lane.b32.xlu0 %v385, 36
      %v454 = vpop.permute.xlu0 %453
      %455 = vrot.lane.b32.xlu0 %v388, 36
      %v456 = vpop.permute.xlu0 %455
      %457 = vrot.lane.b32.xlu0 %v391, 36
      %v458 = vpop.permute.xlu0 %457
      %459 = vrot.lane.b32.xlu0 %v444, 36
      %v460 = vpop.permute.xlu0 %459
      %vm469 = vcmask 97280
      %v470 = vsel %vm469, %v333, %v393
      %v471 = vsel %vm469, %v335, %v395
      %v472 = vsel %vm469, %v337, %v397
      %v473 = vsel %vm469, %v339, %v399
      %v474 = vsel %vm469, %v341, %v401
      %v475 = vsel %vm469, %v343, %v403
      %v476 = vsel %vm469, %v345, %v405
      %v477 = vsel %vm469, %v347, %v407
      %vm478 = vcmask 195584
      %v479 = vsel %vm478, %v470, %v418
      %v480 = vsel %vm478, %v471, %v420
      %v481 = vsel %vm478, %v472, %v422
      %v482 = vsel %vm478, %v473, %v424
      %v483 = vsel %vm478, %v474, %v426
      %v484 = vsel %vm478, %v475, %v428
      %v485 = vsel %vm478, %v476, %v430
      %v486 = vsel %vm478, %v477, %v432
      %vm487 = vcmask 293888
      %v488 = vsel %vm487, %v479, %v446
      %v489 = vsel %vm487, %v480, %v448
      %v490 = vsel %vm487, %v481, %v450
      %v491 = vsel %vm487, %v482, %v452
      %v492 = vsel %vm487, %v483, %v454
      %v493 = vsel %vm487, %v484, %v456
      %v494 = vsel %vm487, %v485, %v458
      %v495 = vsel %vm487, %v486, %v460
      %v496 = vld [vmem:[%s1] sm:$0xff]
      %v497 = vld [vmem:[%s1 + $0x8] sm:$0xff]
      %v498 = vld [vmem:[%s1 + $0x10] sm:$0xff]
      %v499 = vld [vmem:[%s1 + $0x18] sm:$0xff]
      %v500 = vld [vmem:[%s1 + $0x20] sm:$0xff]
      %v501 = vld [vmem:[%s1 + $0x28] sm:$0xff]
      %v502 = vld [vmem:[%s5] sm:$0x1]
      %v504 = vlaneseq
      %v505 = vshrl.u32 %v504, 7
      %v506 = vsub.s32 0, %v505
      %v507 = vrot.slane %v502, %v506
      %vm509 = vcmask 392192
      %v511 = vsel %vm509, %v488, 0
      %v514 = vsel %vm509, %v489, 0
      %v517 = vsel %vm509, %v490, 0
      %v520 = vsel %vm509, %v491, 0
      %v523 = vsel %vm509, %v492, 0
      %v526 = vsel %vm509, %v493, 0
      %v529 = vsel %vm509, %v494, 0
      %v532 = vsel %vm509, %v495, 0
      %534 = vmatprep.subr.mxu0 0.0
      %535 = vmatpush1.msra.mxu0 0.0
      %536 = vmatprep.subr.mxu0 0.0
      %537 = vmatpush1.msra.mxu0 0.0
      %538 = vmatprep.subr.mxu0 0.0
      %539 = vmatpush1.msra.mxu0 0.0
      %540 = vmatprep.subr.mxu0 0.0
      %541 = vmatpush1.msra.mxu0 0.0
      %542 = vmatprep.subr.mxu0 0.0
      %543 = vmatpush1.msra.mxu0 0.0
      %544 = vmatprep.subr.mxu0 0.0
      %545 = vmatpush1.msra.mxu0 0.0
      %546 = vmatprep.subr.mxu0 0.0
      %547 = vmatpush1.msra.mxu0 0.0
      %548 = vmatprep.subr.mxu0 0.0
      %549 = vmatpush1.msra.mxu0 0.0
      %550 = vmatprep.subr.mxu0 0.0
      %551 = vmatpush1.msra.mxu0 0.0
      %552 = vmatprep.subr.mxu0 0.0
      %553 = vmatpush1.msra.mxu0 0.0
      %554 = vmatprep.subr.mxu0 0.0
      %555 = vmatpush1.msra.mxu0 %v501
      %556 = vmatprep.subr.mxu0 0.0
      %557 = vmatpush1.msra.mxu0 %v500
      %558 = vmatprep.subr.mxu0 0.0
      %559 = vmatpush1.msra.mxu0 %v499
      %560 = vmatprep.subr.mxu0 0.0
      %561 = vmatpush1.msra.mxu0 %v498
      %562 = vmatprep.subr.mxu0 0.0
      %563 = vmatpush1.msra.mxu0 %v497
      %564 = vmatprep.subr.mxu0 0.0
      %565 = vmatpush1.msra.mxu0 %v496
      %566 = vmatprep.subr.mxu0 0.0
      %567 = vmatpush2.msra.mxu0 0.0
      %568 = vmatprep.subr.mxu0 0.0
      %569 = vmatpush2.msra.mxu0 0.0
      %570 = vmatprep.subr.mxu0 0.0
      %571 = vmatpush2.msra.mxu0 0.0
      %572 = vmatprep.subr.mxu0 0.0
      %573 = vmatpush2.msra.mxu0 0.0
      %574 = vmatprep.subr.mxu0 0.0
      %575 = vmatpush2.msra.mxu0 0.0
      %576 = vmatprep.subr.mxu0 0.0
      %577 = vmatpush2.msra.mxu0 0.0
      %578 = vmatprep.subr.mxu0 0.0
      %579 = vmatpush2.msra.mxu0 0.0
      %580 = vmatprep.subr.mxu0 0.0
      %581 = vmatpush2.msra.mxu0 0.0
      %582 = vmatprep.subr.mxu0 0.0
      %583 = vmatpush2.msra.mxu0 0.0
      %584 = vmatprep.subr.mxu0 0.0
      %585 = vmatpush2.msra.mxu0 0.0
      %586 = vmatprep.subr.mxu0 0.0
      %587 = vmatpush2.msra.mxu0 0.0
      %588 = vmatprep.subr.mxu0 0.0
      %589 = vmatpush2.msra.mxu0 0.0
      %590 = vmatprep.subr.mxu0 0.0
      %591 = vmatpush2.msra.mxu0 0.0
      %592 = vmatprep.subr.mxu0 0.0
      %593 = vmatpush2.msra.mxu0 0.0
      %594 = vmatprep.subr.mxu0 0.0
      %595 = vmatpush2.msra.mxu0 0.0
      %596 = vmatprep.subr.mxu0 0.0
      %597 = vmatpush2.msra.mxu0 0.0
      %598 = vmatprep.mubr.f32.mxu0 0.0
      %599 = vmatmul.mubr.f32.gmra.mxu0 %v511
      %v600 = vpop.f32.mrf.mxu0
      %v601 = vadd.f32 %v507, %v600
      %v602 = vpop.f32.mrf.mxu0
      %603 = vmatprep.mubr.f32.mxu0 0.0
      %604 = vmatmul.mubr.f32.gmra.mxu0 %v514
      %v605 = vpop.f32.mrf.mxu0
      %v606 = vadd.f32 %v507, %v605
      %v607 = vpop.f32.mrf.mxu0
      %608 = vmatprep.mubr.f32.mxu0 0.0
      %609 = vmatmul.mubr.f32.gmra.mxu0 %v517
      %v610 = vpop.f32.mrf.mxu0
      %v611 = vadd.f32 %v507, %v610
      %v612 = vpop.f32.mrf.mxu0
      %613 = vmatprep.mubr.f32.mxu0 0.0
      %614 = vmatmul.mubr.f32.gmra.mxu0 %v520
      %v615 = vpop.f32.mrf.mxu0
      %v616 = vadd.f32 %v507, %v615
      %v617 = vpop.f32.mrf.mxu0
      %618 = vmatprep.mubr.f32.mxu0 0.0
      %619 = vmatmul.mubr.f32.gmra.mxu0 %v523
      %v620 = vpop.f32.mrf.mxu0
      %v621 = vadd.f32 %v507, %v620
      %v622 = vpop.f32.mrf.mxu0
      %623 = vmatprep.mubr.f32.mxu0 0.0
      %624 = vmatmul.mubr.f32.gmra.mxu0 %v526
      %v625 = vpop.f32.mrf.mxu0
      %v626 = vadd.f32 %v507, %v625
      %v627 = vpop.f32.mrf.mxu0
      %628 = vmatprep.mubr.f32.mxu0 0.0
      %629 = vmatmul.mubr.f32.gmra.mxu0 %v529
      %v630 = vpop.f32.mrf.mxu0
      %v631 = vadd.f32 %v507, %v630
      %v632 = vpop.f32.mrf.mxu0
      %633 = vmatprep.mubr.f32.mxu0 0.0
      %634 = vmatmul.mubr.f32.gmra.mxu0 %v532
      %v635 = vpop.f32.mrf.mxu0
      %v636 = vadd.f32 %v507, %v635
      %v637 = vpop.f32.mrf.mxu0
      %638 = vdwg.mxu0
      %vm639 = vcmp.ge.f32.partialorder %v601, 0.0
      %vm640 = vcmp.ge.f32.partialorder %v606, 0.0
      %vm641 = vcmp.ge.f32.partialorder %v611, 0.0
      %vm642 = vcmp.ge.f32.partialorder %v616, 0.0
      %vm643 = vcmp.ge.f32.partialorder %v621, 0.0
      %vm644 = vcmp.ge.f32.partialorder %v626, 0.0
      %vm645 = vcmp.ge.f32.partialorder %v631, 0.0
      %vm646 = vcmp.ge.f32.partialorder %v636, 0.0
      %v647 = vmul.f32 %v601, 0.2
      %v648 = vmul.f32 %v606, 0.2
      %v649 = vmul.f32 %v611, 0.2
      %v650 = vmul.f32 %v616, 0.2
      %v651 = vmul.f32 %v621, 0.2
      %v652 = vmul.f32 %v626, 0.2
      %v653 = vmul.f32 %v631, 0.2
      %v654 = vmul.f32 %v636, 0.2
      %v655 = vsel %vm639, %v601, %v647
      %v656 = vsel %vm640, %v606, %v648
      %v657 = vsel %vm641, %v611, %v649
      %v658 = vsel %vm642, %v616, %v650
      %v659 = vsel %vm643, %v621, %v651
      %v660 = vsel %vm644, %v626, %v652
      %v661 = vsel %vm645, %v631, %v653
      %v662 = vsel %vm646, %v636, %v654
      %vm663 = vcmask 130048
      %664 = vst.msk [vmem:[#allocation2] sm:$0xff] %vm663, 0.0
      %vm665 = vcmask 123904
      %666 = vst.msk [vmem:[#allocation2 + $0x8] sm:$0x3] %vm665, 0.0
      %667 = vst.msk [vmem:[#allocation2 + $0x10] sm:$0xff] %vm663, 0.0
      %668 = vst.msk [vmem:[#allocation2 + $0x18] sm:$0x3] %vm665, 0.0
      %669 = vst.msk [vmem:[#allocation2 + $0x20] sm:$0xff] %vm663, 0.0
      %670 = vst.msk [vmem:[#allocation2 + $0x28] sm:$0x3] %vm665, 0.0
      %671 = vst.msk [vmem:[#allocation2 + $0x30] sm:$0xff] %vm663, 0.0
      %672 = vst.msk [vmem:[#allocation2 + $0x38] sm:$0x3] %vm665, 0.0
      %673 = vst.msk [vmem:[#allocation2 + $0x40] sm:$0xff] %vm663, 0.0
      %674 = vst.msk [vmem:[#allocation2 + $0x48] sm:$0x3] %vm665, 0.0
      %675 = vst.msk [vmem:[#allocation2 + $0x50] sm:$0xff] %vm663, 0.0
      %676 = vst.msk [vmem:[#allocation2 + $0x58] sm:$0x3] %vm665, 0.0
      %677 = vst.msk [vmem:[#allocation2 + $0x60] sm:$0xff] %vm663, 0.0
      %678 = vst.msk [vmem:[#allocation2 + $0x68] sm:$0x3] %vm665, 0.0
      %679 = vst.msk [vmem:[#allocation2 + $0x70] sm:$0xff] %vm663, 0.0
      %680 = vst.msk [vmem:[#allocation2 + $0x78] sm:$0x3] %vm665, 0.0
      %681 = vst.msk [vmem:[#allocation2 + $0x80] sm:$0xff] %vm663, 0.0
      %682 = vst.msk [vmem:[#allocation2 + $0x88] sm:$0x3] %vm665, 0.0
      %683 = vst.msk [vmem:[#allocation2 + $0x90] sm:$0xff] %vm663, 0.0
      %684 = vst.msk [vmem:[#allocation2 + $0x98] sm:$0x3] %vm665, 0.0
      %s685 = scalar_lea.vmem [#allocation2], 16
      %686 = vst.msk [vmem:[%s685 + $0x1] sm:$0xff] %vm663, %v655
      %687 = vst.msk [vmem:[%s685 + $0x11] sm:$0xff] %vm663, %v656
      %688 = vst.msk [vmem:[%s685 + $0x21] sm:$0xff] %vm663, %v657
      %689 = vst.msk [vmem:[%s685 + $0x31] sm:$0xff] %vm663, %v658
      %690 = vst.msk [vmem:[%s685 + $0x41] sm:$0xff] %vm663, %v659
      %691 = vst.msk [vmem:[%s685 + $0x51] sm:$0xff] %vm663, %v660
      %692 = vst.msk [vmem:[%s685 + $0x61] sm:$0xff] %vm663, %v661
      %693 = vst.msk [vmem:[%s685 + $0x71] sm:$0xff] %vm663, %v662
      %v694 = vld [vmem:[#allocation2] sm:$0xff]
      %v695 = vld [vmem:[#allocation2 + $0x10] sm:$0xff]
      %v696 = vld [vmem:[#allocation2 + $0x20] sm:$0xff]
      %v697 = vld [vmem:[#allocation2 + $0x30] sm:$0xff]
      %v698 = vld [vmem:[#allocation2 + $0x40] sm:$0xff]
      %v699 = vld [vmem:[#allocation2 + $0x50] sm:$0xff]
      %v700 = vld [vmem:[#allocation2 + $0x60] sm:$0xff]
      %v701 = vld [vmem:[#allocation2 + $0x70] sm:$0xff]
      %v702 = vld [vmem:[#allocation2 + $0x1] sm:$0xff]
      %v703 = vld [vmem:[#allocation2 + $0x11] sm:$0xff]
      %v704 = vld [vmem:[#allocation2 + $0x21] sm:$0xff]
      %v705 = vld [vmem:[#allocation2 + $0x31] sm:$0xff]
      %v706 = vld [vmem:[#allocation2 + $0x41] sm:$0xff]
      %v707 = vld [vmem:[#allocation2 + $0x51] sm:$0xff]
      %v708 = vld [vmem:[#allocation2 + $0x61] sm:$0xff]
      %v709 = vld [vmem:[#allocation2 + $0x71] sm:$0xff]
      %v710 = vld [vmem:[#allocation2 + $0x2] sm:$0xff]
      %v711 = vld [vmem:[#allocation2 + $0x12] sm:$0xff]
      %v712 = vld [vmem:[#allocation2 + $0x22] sm:$0xff]
      %v713 = vld [vmem:[#allocation2 + $0x32] sm:$0xff]
      %v714 = vld [vmem:[#allocation2 + $0x42] sm:$0xff]
      %v715 = vld [vmem:[#allocation2 + $0x52] sm:$0xff]
      %v716 = vld [vmem:[#allocation2 + $0x62] sm:$0xff]
      %v717 = vld [vmem:[#allocation2 + $0x72] sm:$0xff]
      %v718 = vld [vmem:[%s685] sm:$0xff]
      %v719 = vld [vmem:[%s685 + $0x10] sm:$0xff]
      %v720 = vld [vmem:[%s685 + $0x20] sm:$0xff]
      %v721 = vld [vmem:[%s685 + $0x30] sm:$0xff]
      %v722 = vld [vmem:[%s685 + $0x40] sm:$0xff]
      %v723 = vld [vmem:[%s685 + $0x50] sm:$0xff]
      %v724 = vld [vmem:[%s685 + $0x60] sm:$0xff]
      %v725 = vld [vmem:[%s685 + $0x70] sm:$0xff]
      %v726 = vld [vmem:[%s685 + $0x1] sm:$0xff]
      %v727 = vld [vmem:[%s685 + $0x11] sm:$0xff]
      %v728 = vld [vmem:[%s685 + $0x21] sm:$0xff]
      %v729 = vld [vmem:[%s685 + $0x31] sm:$0xff]
      %v730 = vld [vmem:[%s685 + $0x41] sm:$0xff]
      %v731 = vld [vmem:[%s685 + $0x51] sm:$0xff]
      %v732 = vld [vmem:[%s685 + $0x61] sm:$0xff]
      %v733 = vld [vmem:[%s685 + $0x71] sm:$0xff]
      %v734 = vld [vmem:[%s685 + $0x2] sm:$0xff]
      %v735 = vld [vmem:[%s685 + $0x12] sm:$0xff]
      %v736 = vld [vmem:[%s685 + $0x22] sm:$0xff]
      %v737 = vld [vmem:[%s685 + $0x32] sm:$0xff]
      %v738 = vld [vmem:[%s685 + $0x42] sm:$0xff]
      %v739 = vld [vmem:[%s685 + $0x52] sm:$0xff]
      %v740 = vld [vmem:[%s685 + $0x62] sm:$0xff]
      %v741 = vld [vmem:[%s685 + $0x72] sm:$0xff]
      %s742 = scalar_lea.vmem [#allocation2], 32
      %v743 = vld [vmem:[%s742] sm:$0xff]
      %v744 = vld [vmem:[%s742 + $0x10] sm:$0xff]
      %v745 = vld [vmem:[%s742 + $0x20] sm:$0xff]
      %v746 = vld [vmem:[%s742 + $0x30] sm:$0xff]
      %v747 = vld [vmem:[%s742 + $0x40] sm:$0xff]
      %v748 = vld [vmem:[%s742 + $0x50] sm:$0xff]
      %v749 = vld [vmem:[%s742 + $0x60] sm:$0xff]
      %v750 = vld [vmem:[%s742 + $0x70] sm:$0xff]
      %v751 = vld [vmem:[%s742 + $0x1] sm:$0xff]
      %v752 = vld [vmem:[%s742 + $0x11] sm:$0xff]
      %v753 = vld [vmem:[%s742 + $0x21] sm:$0xff]
      %v754 = vld [vmem:[%s742 + $0x31] sm:$0xff]
      %v755 = vld [vmem:[%s742 + $0x41] sm:$0xff]
      %v756 = vld [vmem:[%s742 + $0x51] sm:$0xff]
      %v757 = vld [vmem:[%s742 + $0x61] sm:$0xff]
      %v758 = vld [vmem:[%s742 + $0x71] sm:$0xff]
      %v759 = vld [vmem:[%s742 + $0x2] sm:$0xff]
      %v760 = vld [vmem:[%s742 + $0x12] sm:$0xff]
      %v761 = vld [vmem:[%s742 + $0x22] sm:$0xff]
      %v762 = vld [vmem:[%s742 + $0x32] sm:$0xff]
      %v763 = vld [vmem:[%s742 + $0x42] sm:$0xff]
      %v764 = vld [vmem:[%s742 + $0x52] sm:$0xff]
      %v765 = vld [vmem:[%s742 + $0x62] sm:$0xff]
      %v766 = vld [vmem:[%s742 + $0x72] sm:$0xff]
      %775 = vrot.lane.b32.xlu0 %v702, 16
      %v776 = vpop.permute.xlu0 %775
      %777 = vrot.lane.b32.xlu0 %v703, 16
      %v778 = vpop.permute.xlu0 %777
      %779 = vrot.lane.b32.xlu0 %v704, 16
      %v780 = vpop.permute.xlu0 %779
      %781 = vrot.lane.b32.xlu0 %v705, 16
      %v782 = vpop.permute.xlu0 %781
      %783 = vrot.lane.b32.xlu0 %v706, 16
      %v784 = vpop.permute.xlu0 %783
      %785 = vrot.lane.b32.xlu0 %v707, 16
      %v786 = vpop.permute.xlu0 %785
      %787 = vrot.lane.b32.xlu0 %v708, 16
      %v788 = vpop.permute.xlu0 %787
      %789 = vrot.lane.b32.xlu0 %v709, 16
      %v790 = vpop.permute.xlu0 %789
      %807 = vrot.lane.b32.xlu0 %v710, 32
      %v808 = vpop.permute.xlu0 %807
      %809 = vrot.lane.b32.xlu0 %v711, 32
      %v810 = vpop.permute.xlu0 %809
      %811 = vrot.lane.b32.xlu0 %v712, 32
      %v812 = vpop.permute.xlu0 %811
      %813 = vrot.lane.b32.xlu0 %v713, 32
      %v814 = vpop.permute.xlu0 %813
      %815 = vrot.lane.b32.xlu0 %v714, 32
      %v816 = vpop.permute.xlu0 %815
      %817 = vrot.lane.b32.xlu0 %v715, 32
      %v818 = vpop.permute.xlu0 %817
      %819 = vrot.lane.b32.xlu0 %v716, 32
      %v820 = vpop.permute.xlu0 %819
      %821 = vrot.lane.b32.xlu0 %v717, 32
      %v822 = vpop.permute.xlu0 %821
      %839 = vrot.lane.b32.xlu0 %v718, 48
      %v840 = vpop.permute.xlu0 %839
      %841 = vrot.lane.b32.xlu0 %v719, 48
      %v842 = vpop.permute.xlu0 %841
      %843 = vrot.lane.b32.xlu0 %v720, 48
      %v844 = vpop.permute.xlu0 %843
      %845 = vrot.lane.b32.xlu0 %v721, 48
      %v846 = vpop.permute.xlu0 %845
      %847 = vrot.lane.b32.xlu0 %v722, 48
      %v848 = vpop.permute.xlu0 %847
      %849 = vrot.lane.b32.xlu0 %v723, 48
      %v850 = vpop.permute.xlu0 %849
      %851 = vrot.lane.b32.xlu0 %v724, 48
      %v852 = vpop.permute.xlu0 %851
      %853 = vrot.lane.b32.xlu0 %v725, 48
      %v854 = vpop.permute.xlu0 %853
      %871 = vrot.lane.b32.xlu0 %v726, 64
      %v872 = vpop.permute.xlu0 %871
      %873 = vrot.lane.b32.xlu0 %v727, 64
      %v874 = vpop.permute.xlu0 %873
      %875 = vrot.lane.b32.xlu0 %v728, 64
      %v876 = vpop.permute.xlu0 %875
      %877 = vrot.lane.b32.xlu0 %v729, 64
      %v878 = vpop.permute.xlu0 %877
      %879 = vrot.lane.b32.xlu0 %v730, 64
      %v880 = vpop.permute.xlu0 %879
      %881 = vrot.lane.b32.xlu0 %v731, 64
      %v882 = vpop.permute.xlu0 %881
      %883 = vrot.lane.b32.xlu0 %v732, 64
      %v884 = vpop.permute.xlu0 %883
      %885 = vrot.lane.b32.xlu0 %v733, 64
      %v886 = vpop.permute.xlu0 %885
      %903 = vrot.lane.b32.xlu0 %v734, 80
      %v904 = vpop.permute.xlu0 %903
      %905 = vrot.lane.b32.xlu0 %v735, 80
      %v906 = vpop.permute.xlu0 %905
      %907 = vrot.lane.b32.xlu0 %v736, 80
      %v908 = vpop.permute.xlu0 %907
      %909 = vrot.lane.b32.xlu0 %v737, 80
      %v910 = vpop.permute.xlu0 %909
      %911 = vrot.lane.b32.xlu0 %v738, 80
      %v912 = vpop.permute.xlu0 %911
      %913 = vrot.lane.b32.xlu0 %v739, 80
      %v914 = vpop.permute.xlu0 %913
      %915 = vrot.lane.b32.xlu0 %v740, 80
      %v916 = vpop.permute.xlu0 %915
      %917 = vrot.lane.b32.xlu0 %v741, 80
      %v918 = vpop.permute.xlu0 %917
      %935 = vrot.lane.b32.xlu0 %v743, 96
      %v936 = vpop.permute.xlu0 %935
      %937 = vrot.lane.b32.xlu0 %v744, 96
      %v938 = vpop.permute.xlu0 %937
      %939 = vrot.lane.b32.xlu0 %v745, 96
      %v940 = vpop.permute.xlu0 %939
      %941 = vrot.lane.b32.xlu0 %v746, 96
      %v942 = vpop.permute.xlu0 %941
      %943 = vrot.lane.b32.xlu0 %v747, 96
      %v944 = vpop.permute.xlu0 %943
      %945 = vrot.lane.b32.xlu0 %v748, 96
      %v946 = vpop.permute.xlu0 %945
      %947 = vrot.lane.b32.xlu0 %v749, 96
      %v948 = vpop.permute.xlu0 %947
      %949 = vrot.lane.b32.xlu0 %v750, 96
      %v950 = vpop.permute.xlu0 %949
      %967 = vrot.lane.b32.xlu0 %v751, 112
      %v968 = vpop.permute.xlu0 %967
      %969 = vrot.lane.b32.xlu0 %v752, 112
      %v970 = vpop.permute.xlu0 %969
      %971 = vrot.lane.b32.xlu0 %v753, 112
      %v972 = vpop.permute.xlu0 %971
      %973 = vrot.lane.b32.xlu0 %v754, 112
      %v974 = vpop.permute.xlu0 %973
      %975 = vrot.lane.b32.xlu0 %v755, 112
      %v976 = vpop.permute.xlu0 %975
      %977 = vrot.lane.b32.xlu0 %v756, 112
      %v978 = vpop.permute.xlu0 %977
      %979 = vrot.lane.b32.xlu0 %v757, 112
      %v980 = vpop.permute.xlu0 %979
      %981 = vrot.lane.b32.xlu0 %v758, 112
      %v982 = vpop.permute.xlu0 %981
      %v991 = vsel %vm663, %v694, %v776
      %v992 = vsel %vm663, %v695, %v778
      %v993 = vsel %vm663, %v696, %v780
      %v994 = vsel %vm663, %v697, %v782
      %v995 = vsel %vm663, %v698, %v784
      %v996 = vsel %vm663, %v699, %v786
      %v997 = vsel %vm663, %v700, %v788
      %v998 = vsel %vm663, %v701, %v790
      %vm999 = vcmask 261120
      %v1000 = vsel %vm999, %v991, %v808
      %v1001 = vsel %vm999, %v992, %v810
      %v1002 = vsel %vm999, %v993, %v812
      %v1003 = vsel %vm999, %v994, %v814
      %v1004 = vsel %vm999, %v995, %v816
      %v1005 = vsel %vm999, %v996, %v818
      %v1006 = vsel %vm999, %v997, %v820
      %v1007 = vsel %vm999, %v998, %v822
      %v1008 = vsel %vm509, %v1000, %v840
      %v1009 = vsel %vm509, %v1001, %v842
      %v1010 = vsel %vm509, %v1002, %v844
      %v1011 = vsel %vm509, %v1003, %v846
      %v1012 = vsel %vm509, %v1004, %v848
      %v1013 = vsel %vm509, %v1005, %v850
      %v1014 = vsel %vm509, %v1006, %v852
      %v1015 = vsel %vm509, %v1007, %v854
      %vm1016 = vcmask 523264
      %v1017 = vsel %vm1016, %v1008, %v872
      %v1018 = vsel %vm1016, %v1009, %v874
      %v1019 = vsel %vm1016, %v1010, %v876
      %v1020 = vsel %vm1016, %v1011, %v878
      %v1021 = vsel %vm1016, %v1012, %v880
      %v1022 = vsel %vm1016, %v1013, %v882
      %v1023 = vsel %vm1016, %v1014, %v884
      %v1024 = vsel %vm1016, %v1015, %v886
      %vm1025 = vcmask 654336
      %v1026 = vsel %vm1025, %v1017, %v904
      %v1027 = vsel %vm1025, %v1018, %v906
      %v1028 = vsel %vm1025, %v1019, %v908
      %v1029 = vsel %vm1025, %v1020, %v910
      %v1030 = vsel %vm1025, %v1021, %v912
      %v1031 = vsel %vm1025, %v1022, %v914
      %v1032 = vsel %vm1025, %v1023, %v916
      %v1033 = vsel %vm1025, %v1024, %v918
      %vm1034 = vcmask 785408
      %v1035 = vsel %vm1034, %v1026, %v936
      %v1036 = vsel %vm1034, %v1027, %v938
      %v1037 = vsel %vm1034, %v1028, %v940
      %v1038 = vsel %vm1034, %v1029, %v942
      %v1039 = vsel %vm1034, %v1030, %v944
      %v1040 = vsel %vm1034, %v1031, %v946
      %v1041 = vsel %vm1034, %v1032, %v948
      %v1042 = vsel %vm1034, %v1033, %v950
      %vm1043 = vcmask 916480
      %v1044 = vsel %vm1043, %v1035, %v968
      %v1045 = vsel %vm1043, %v1036, %v970
      %v1046 = vsel %vm1043, %v1037, %v972
      %v1047 = vsel %vm1043, %v1038, %v974
      %v1048 = vsel %vm1043, %v1039, %v976
      %v1049 = vsel %vm1043, %v1040, %v978
      %v1050 = vsel %vm1043, %v1041, %v980
      %v1051 = vsel %vm1043, %v1042, %v982
      %v1052 = vld [vmem:[%s2] sm:$0xff]
      %v1053 = vld [vmem:[%s2 + $0x8] sm:$0xff]
      %v1054 = vld [vmem:[%s2 + $0x10] sm:$0xff]
      %v1055 = vld [vmem:[%s2 + $0x18] sm:$0xff]
      %v1056 = vld [vmem:[%s2 + $0x20] sm:$0xff]
      %v1057 = vld [vmem:[%s2 + $0x28] sm:$0xff]
      %v1058 = vld [vmem:[%s2 + $0x30] sm:$0xff]
      %v1059 = vld [vmem:[%s2 + $0x38] sm:$0xff]
      %v1060 = vld [vmem:[%s2 + $0x40] sm:$0xff]
      %v1061 = vld [vmem:[%s2 + $0x48] sm:$0xff]
      %v1062 = vld [vmem:[%s2 + $0x50] sm:$0xff]
      %v1063 = vld [vmem:[%s2 + $0x58] sm:$0xff]
      %v1064 = vld [vmem:[%s2 + $0x60] sm:$0xff]
      %v1065 = vld [vmem:[%s2 + $0x68] sm:$0xff]
      %v1066 = vld [vmem:[%s2 + $0x70] sm:$0xff]
      %v1067 = vld [vmem:[%s2 + $0x78] sm:$0xff]
      %v1068 = vld [vmem:[%s2 + $0x80] sm:$0xff]
      %v1069 = vld [vmem:[%s2 + $0x88] sm:$0xff]
      %v1070 = vld [vmem:[%s6] sm:$0x1]
      %v1072 = vlaneseq
      %v1073 = vshrl.u32 %v1072, 7
      %v1074 = vsub.s32 0, %v1073
      %v1075 = vrot.slane %v1070, %v1074
      %v1078 = vsel %vm663, %v759, 0
      %v1081 = vsel %vm663, %v760, 0
      %v1084 = vsel %vm663, %v761, 0
      %v1087 = vsel %vm663, %v762, 0
      %v1090 = vsel %vm663, %v763, 0
      %v1093 = vsel %vm663, %v764, 0
      %v1096 = vsel %vm663, %v765, 0
      %v1099 = vsel %vm663, %v766, 0
      %1101 = vmatprep.subr.mxu0 0.0
      %1102 = vmatpush1.msra.mxu0 %v1067
      %1103 = vmatprep.subr.mxu0 0.0
      %1104 = vmatpush1.msra.mxu0 %v1066
      %1105 = vmatprep.subr.mxu0 0.0
      %1106 = vmatpush1.msra.mxu0 %v1065
      %1107 = vmatprep.subr.mxu0 0.0
      %1108 = vmatpush1.msra.mxu0 %v1064
      %1109 = vmatprep.subr.mxu0 0.0
      %1110 = vmatpush1.msra.mxu0 %v1063
      %1111 = vmatprep.subr.mxu0 0.0
      %1112 = vmatpush1.msra.mxu0 %v1062
      %1113 = vmatprep.subr.mxu0 0.0
      %1114 = vmatpush1.msra.mxu0 %v1061
      %1115 = vmatprep.subr.mxu0 0.0
      %1116 = vmatpush1.msra.mxu0 %v1060
      %1117 = vmatprep.subr.mxu0 0.0
      %1118 = vmatpush1.msra.mxu0 %v1059
      %1119 = vmatprep.subr.mxu0 0.0
      %1120 = vmatpush1.msra.mxu0 %v1058
      %1121 = vmatprep.subr.mxu0 0.0
      %1122 = vmatpush1.msra.mxu0 %v1057
      %1123 = vmatprep.subr.mxu0 0.0
      %1124 = vmatpush1.msra.mxu0 %v1056
      %1125 = vmatprep.subr.mxu0 0.0
      %1126 = vmatpush1.msra.mxu0 %v1055
      %1127 = vmatprep.subr.mxu0 0.0
      %1128 = vmatpush1.msra.mxu0 %v1054
      %1129 = vmatprep.subr.mxu0 0.0
      %1130 = vmatpush1.msra.mxu0 %v1053
      %1131 = vmatprep.subr.mxu0 0.0
      %1132 = vmatpush1.msra.mxu0 %v1052
      %1133 = vmatprep.subr.mxu0 0.0
      %1134 = vmatpush2.msra.mxu0 0.0
      %1135 = vmatprep.subr.mxu0 0.0
      %1136 = vmatpush2.msra.mxu0 0.0
      %1137 = vmatprep.subr.mxu0 0.0
      %1138 = vmatpush2.msra.mxu0 0.0
      %1139 = vmatprep.subr.mxu0 0.0
      %1140 = vmatpush2.msra.mxu0 0.0
      %1141 = vmatprep.subr.mxu0 0.0
      %1142 = vmatpush2.msra.mxu0 0.0
      %1143 = vmatprep.subr.mxu0 0.0
      %1144 = vmatpush2.msra.mxu0 0.0
      %1145 = vmatprep.subr.mxu0 0.0
      %1146 = vmatpush2.msra.mxu0 0.0
      %1147 = vmatprep.subr.mxu0 0.0
      %1148 = vmatpush2.msra.mxu0 0.0
      %1149 = vmatprep.subr.mxu0 0.0
      %1150 = vmatpush2.msra.mxu0 0.0
      %1151 = vmatprep.subr.mxu0 0.0
      %1152 = vmatpush2.msra.mxu0 0.0
      %1153 = vmatprep.subr.mxu0 0.0
      %1154 = vmatpush2.msra.mxu0 0.0
      %1155 = vmatprep.subr.mxu0 0.0
      %1156 = vmatpush2.msra.mxu0 0.0
      %1157 = vmatprep.subr.mxu0 0.0
      %1158 = vmatpush2.msra.mxu0 0.0
      %1159 = vmatprep.subr.mxu0 0.0
      %1160 = vmatpush2.msra.mxu0 0.0
      %1161 = vmatprep.subr.mxu0 0.0
      %1162 = vmatpush2.msra.mxu0 %v1069
      %1163 = vmatprep.subr.mxu0 0.0
      %1164 = vmatpush2.msra.mxu0 %v1068
      %1165 = vmatprep.mubr.f32.mxu0 %v1078
      %1166 = vmatmul.mubr.f32.gmra.mxu0 %v1044
      %v1167 = vpop.f32.mrf.mxu0
      %v1168 = vadd.f32 %v1075, %v1167
      %v1169 = vpop.f32.mrf.mxu0
      %1170 = vmatprep.mubr.f32.mxu0 %v1081
      %1171 = vmatmul.mubr.f32.gmra.mxu0 %v1045
      %v1172 = vpop.f32.mrf.mxu0
      %v1173 = vadd.f32 %v1075, %v1172
      %v1174 = vpop.f32.mrf.mxu0
      %1175 = vmatprep.mubr.f32.mxu0 %v1084
      %1176 = vmatmul.mubr.f32.gmra.mxu0 %v1046
      %v1177 = vpop.f32.mrf.mxu0
      %v1178 = vadd.f32 %v1075, %v1177
      %v1179 = vpop.f32.mrf.mxu0
      %1180 = vmatprep.mubr.f32.mxu0 %v1087
      %1181 = vmatmul.mubr.f32.gmra.mxu0 %v1047
      %v1182 = vpop.f32.mrf.mxu0
      %v1183 = vadd.f32 %v1075, %v1182
      %v1184 = vpop.f32.mrf.mxu0
      %1185 = vmatprep.mubr.f32.mxu0 %v1090
      %1186 = vmatmul.mubr.f32.gmra.mxu0 %v1048
      %v1187 = vpop.f32.mrf.mxu0
      %v1188 = vadd.f32 %v1075, %v1187
      %v1189 = vpop.f32.mrf.mxu0
      %1190 = vmatprep.mubr.f32.mxu0 %v1093
      %1191 = vmatmul.mubr.f32.gmra.mxu0 %v1049
      %v1192 = vpop.f32.mrf.mxu0
      %v1193 = vadd.f32 %v1075, %v1192
      %v1194 = vpop.f32.mrf.mxu0
      %1195 = vmatprep.mubr.f32.mxu0 %v1096
      %1196 = vmatmul.mubr.f32.gmra.mxu0 %v1050
      %v1197 = vpop.f32.mrf.mxu0
      %v1198 = vadd.f32 %v1075, %v1197
      %v1199 = vpop.f32.mrf.mxu0
      %1200 = vmatprep.mubr.f32.mxu0 %v1099
      %1201 = vmatmul.mubr.f32.gmra.mxu0 %v1051
      %v1202 = vpop.f32.mrf.mxu0
      %v1203 = vadd.f32 %v1075, %v1202
      %v1204 = vpop.f32.mrf.mxu0
      %1205 = vdwg.mxu0
      %vm1206 = vcmp.ge.f32.partialorder %v1168, 0.0
      %vm1207 = vcmp.ge.f32.partialorder %v1173, 0.0
      %vm1208 = vcmp.ge.f32.partialorder %v1178, 0.0
      %vm1209 = vcmp.ge.f32.partialorder %v1183, 0.0
      %vm1210 = vcmp.ge.f32.partialorder %v1188, 0.0
      %vm1211 = vcmp.ge.f32.partialorder %v1193, 0.0
      %vm1212 = vcmp.ge.f32.partialorder %v1198, 0.0
      %vm1213 = vcmp.ge.f32.partialorder %v1203, 0.0
      %v1214 = vmul.f32 %v1168, 0.2
      %v1215 = vmul.f32 %v1173, 0.2
      %v1216 = vmul.f32 %v1178, 0.2
      %v1217 = vmul.f32 %v1183, 0.2
      %v1218 = vmul.f32 %v1188, 0.2
      %v1219 = vmul.f32 %v1193, 0.2
      %v1220 = vmul.f32 %v1198, 0.2
      %v1221 = vmul.f32 %v1203, 0.2
      %v1222 = vsel %vm1206, %v1168, %v1214
      %v1223 = vsel %vm1207, %v1173, %v1215
      %v1224 = vsel %vm1208, %v1178, %v1216
      %v1225 = vsel %vm1209, %v1183, %v1217
      %v1226 = vsel %vm1210, %v1188, %v1218
      %v1227 = vsel %vm1211, %v1193, %v1219
      %v1228 = vsel %vm1212, %v1198, %v1220
      %v1229 = vsel %vm1213, %v1203, %v1221
      %1230 = vst.msk [vmem:[#allocation3] sm:$0xff] %vm663, 0.0
      %1231 = vst.msk [vmem:[#allocation3 + $0x8] sm:$0x3] %vm665, 0.0
      %1232 = vst.msk [vmem:[#allocation3 + $0x10] sm:$0xff] %vm663, 0.0
      %1233 = vst.msk [vmem:[#allocation3 + $0x18] sm:$0x3] %vm665, 0.0
      %1234 = vst.msk [vmem:[#allocation3 + $0x20] sm:$0xff] %vm663, 0.0
      %1235 = vst.msk [vmem:[#allocation3 + $0x28] sm:$0x3] %vm665, 0.0
      %1236 = vst.msk [vmem:[#allocation3 + $0x30] sm:$0xff] %vm663, 0.0
      %1237 = vst.msk [vmem:[#allocation3 + $0x38] sm:$0x3] %vm665, 0.0
      %1238 = vst.msk [vmem:[#allocation3 + $0x40] sm:$0xff] %vm663, 0.0
      %1239 = vst.msk [vmem:[#allocation3 + $0x48] sm:$0x3] %vm665, 0.0
      %1240 = vst.msk [vmem:[#allocation3 + $0x50] sm:$0xff] %vm663, 0.0
      %1241 = vst.msk [vmem:[#allocation3 + $0x58] sm:$0x3] %vm665, 0.0
      %1242 = vst.msk [vmem:[#allocation3 + $0x60] sm:$0xff] %vm663, 0.0
      %1243 = vst.msk [vmem:[#allocation3 + $0x68] sm:$0x3] %vm665, 0.0
      %1244 = vst.msk [vmem:[#allocation3 + $0x70] sm:$0xff] %vm663, 0.0
      %1245 = vst.msk [vmem:[#allocation3 + $0x78] sm:$0x3] %vm665, 0.0
      %1246 = vst.msk [vmem:[#allocation3 + $0x80] sm:$0xff] %vm663, 0.0
      %1247 = vst.msk [vmem:[#allocation3 + $0x88] sm:$0x3] %vm665, 0.0
      %1248 = vst.msk [vmem:[#allocation3 + $0x90] sm:$0xff] %vm663, 0.0
      %1249 = vst.msk [vmem:[#allocation3 + $0x98] sm:$0x3] %vm665, 0.0
      %s1250 = scalar_lea.vmem [#allocation3], 16
      %1251 = vst.msk [vmem:[%s1250 + $0x1] sm:$0xff] %vm663, %v1222
      %1252 = vst.msk [vmem:[%s1250 + $0x11] sm:$0xff] %vm663, %v1223
      %1253 = vst.msk [vmem:[%s1250 + $0x21] sm:$0xff] %vm663, %v1224
      %1254 = vst.msk [vmem:[%s1250 + $0x31] sm:$0xff] %vm663, %v1225
      %1255 = vst.msk [vmem:[%s1250 + $0x41] sm:$0xff] %vm663, %v1226
      %1256 = vst.msk [vmem:[%s1250 + $0x51] sm:$0xff] %vm663, %v1227
      %1257 = vst.msk [vmem:[%s1250 + $0x61] sm:$0xff] %vm663, %v1228
      %1258 = vst.msk [vmem:[%s1250 + $0x71] sm:$0xff] %vm663, %v1229
      %v1259 = vld [vmem:[#allocation3] sm:$0xff]
      %v1260 = vld [vmem:[#allocation3 + $0x10] sm:$0xff]
      %v1261 = vld [vmem:[#allocation3 + $0x20] sm:$0xff]
      %v1262 = vld [vmem:[#allocation3 + $0x30] sm:$0xff]
      %v1263 = vld [vmem:[#allocation3 + $0x40] sm:$0xff]
      %v1264 = vld [vmem:[#allocation3 + $0x50] sm:$0xff]
      %v1265 = vld [vmem:[#allocation3 + $0x60] sm:$0xff]
      %v1266 = vld [vmem:[#allocation3 + $0x70] sm:$0xff]
      %v1267 = vld [vmem:[#allocation3 + $0x1] sm:$0xff]
      %v1268 = vld [vmem:[#allocation3 + $0x11] sm:$0xff]
      %v1269 = vld [vmem:[#allocation3 + $0x21] sm:$0xff]
      %v1270 = vld [vmem:[#allocation3 + $0x31] sm:$0xff]
      %v1271 = vld [vmem:[#allocation3 + $0x41] sm:$0xff]
      %v1272 = vld [vmem:[#allocation3 + $0x51] sm:$0xff]
      %v1273 = vld [vmem:[#allocation3 + $0x61] sm:$0xff]
      %v1274 = vld [vmem:[#allocation3 + $0x71] sm:$0xff]
      %v1275 = vld [vmem:[#allocation3 + $0x2] sm:$0xff]
      %v1276 = vld [vmem:[#allocation3 + $0x12] sm:$0xff]
      %v1277 = vld [vmem:[#allocation3 + $0x22] sm:$0xff]
      %v1278 = vld [vmem:[#allocation3 + $0x32] sm:$0xff]
      %v1279 = vld [vmem:[#allocation3 + $0x42] sm:$0xff]
      %v1280 = vld [vmem:[#allocation3 + $0x52] sm:$0xff]
      %v1281 = vld [vmem:[#allocation3 + $0x62] sm:$0xff]
      %v1282 = vld [vmem:[#allocation3 + $0x72] sm:$0xff]
      %v1283 = vld [vmem:[%s1250] sm:$0xff]
      %v1284 = vld [vmem:[%s1250 + $0x10] sm:$0xff]
      %v1285 = vld [vmem:[%s1250 + $0x20] sm:$0xff]
      %v1286 = vld [vmem:[%s1250 + $0x30] sm:$0xff]
      %v1287 = vld [vmem:[%s1250 + $0x40] sm:$0xff]
      %v1288 = vld [vmem:[%s1250 + $0x50] sm:$0xff]
      %v1289 = vld [vmem:[%s1250 + $0x60] sm:$0xff]
      %v1290 = vld [vmem:[%s1250 + $0x70] sm:$0xff]
      %v1291 = vld [vmem:[%s1250 + $0x1] sm:$0xff]
      %v1292 = vld [vmem:[%s1250 + $0x11] sm:$0xff]
      %v1293 = vld [vmem:[%s1250 + $0x21] sm:$0xff]
      %v1294 = vld [vmem:[%s1250 + $0x31] sm:$0xff]
      %v1295 = vld [vmem:[%s1250 + $0x41] sm:$0xff]
      %v1296 = vld [vmem:[%s1250 + $0x51] sm:$0xff]
      %v1297 = vld [vmem:[%s1250 + $0x61] sm:$0xff]
      %v1298 = vld [vmem:[%s1250 + $0x71] sm:$0xff]
      %v1299 = vld [vmem:[%s1250 + $0x2] sm:$0xff]
      %v1300 = vld [vmem:[%s1250 + $0x12] sm:$0xff]
      %v1301 = vld [vmem:[%s1250 + $0x22] sm:$0xff]
      %v1302 = vld [vmem:[%s1250 + $0x32] sm:$0xff]
      %v1303 = vld [vmem:[%s1250 + $0x42] sm:$0xff]
      %v1304 = vld [vmem:[%s1250 + $0x52] sm:$0xff]
      %v1305 = vld [vmem:[%s1250 + $0x62] sm:$0xff]
      %v1306 = vld [vmem:[%s1250 + $0x72] sm:$0xff]
      %s1307 = scalar_lea.vmem [#allocation3], 32
      %v1308 = vld [vmem:[%s1307] sm:$0xff]
      %v1309 = vld [vmem:[%s1307 + $0x10] sm:$0xff]
      %v1310 = vld [vmem:[%s1307 + $0x20] sm:$0xff]
      %v1311 = vld [vmem:[%s1307 + $0x30] sm:$0xff]
      %v1312 = vld [vmem:[%s1307 + $0x40] sm:$0xff]
      %v1313 = vld [vmem:[%s1307 + $0x50] sm:$0xff]
      %v1314 = vld [vmem:[%s1307 + $0x60] sm:$0xff]
      %v1315 = vld [vmem:[%s1307 + $0x70] sm:$0xff]
      %v1316 = vld [vmem:[%s1307 + $0x1] sm:$0xff]
      %v1317 = vld [vmem:[%s1307 + $0x11] sm:$0xff]
      %v1318 = vld [vmem:[%s1307 + $0x21] sm:$0xff]
      %v1319 = vld [vmem:[%s1307 + $0x31] sm:$0xff]
      %v1320 = vld [vmem:[%s1307 + $0x41] sm:$0xff]
      %v1321 = vld [vmem:[%s1307 + $0x51] sm:$0xff]
      %v1322 = vld [vmem:[%s1307 + $0x61] sm:$0xff]
      %v1323 = vld [vmem:[%s1307 + $0x71] sm:$0xff]
      %v1324 = vld [vmem:[%s1307 + $0x2] sm:$0xff]
      %v1325 = vld [vmem:[%s1307 + $0x12] sm:$0xff]
      %v1326 = vld [vmem:[%s1307 + $0x22] sm:$0xff]
      %v1327 = vld [vmem:[%s1307 + $0x32] sm:$0xff]
      %v1328 = vld [vmem:[%s1307 + $0x42] sm:$0xff]
      %v1329 = vld [vmem:[%s1307 + $0x52] sm:$0xff]
      %v1330 = vld [vmem:[%s1307 + $0x62] sm:$0xff]
      %v1331 = vld [vmem:[%s1307 + $0x72] sm:$0xff]
      %1340 = vrot.lane.b32.xlu0 %v1267, 16
      %v1341 = vpop.permute.xlu0 %1340
      %1342 = vrot.lane.b32.xlu0 %v1268, 16
      %v1343 = vpop.permute.xlu0 %1342
      %1344 = vrot.lane.b32.xlu0 %v1269, 16
      %v1345 = vpop.permute.xlu0 %1344
      %1346 = vrot.lane.b32.xlu0 %v1270, 16
      %v1347 = vpop.permute.xlu0 %1346
      %1348 = vrot.lane.b32.xlu0 %v1271, 16
      %v1349 = vpop.permute.xlu0 %1348
      %1350 = vrot.lane.b32.xlu0 %v1272, 16
      %v1351 = vpop.permute.xlu0 %1350
      %1352 = vrot.lane.b32.xlu0 %v1273, 16
      %v1353 = vpop.permute.xlu0 %1352
      %1354 = vrot.lane.b32.xlu0 %v1274, 16
      %v1355 = vpop.permute.xlu0 %1354
      %1372 = vrot.lane.b32.xlu0 %v1275, 32
      %v1373 = vpop.permute.xlu0 %1372
      %1374 = vrot.lane.b32.xlu0 %v1276, 32
      %v1375 = vpop.permute.xlu0 %1374
      %1376 = vrot.lane.b32.xlu0 %v1277, 32
      %v1377 = vpop.permute.xlu0 %1376
      %1378 = vrot.lane.b32.xlu0 %v1278, 32
      %v1379 = vpop.permute.xlu0 %1378
      %1380 = vrot.lane.b32.xlu0 %v1279, 32
      %v1381 = vpop.permute.xlu0 %1380
      %1382 = vrot.lane.b32.xlu0 %v1280, 32
      %v1383 = vpop.permute.xlu0 %1382
      %1384 = vrot.lane.b32.xlu0 %v1281, 32
      %v1385 = vpop.permute.xlu0 %1384
      %1386 = vrot.lane.b32.xlu0 %v1282, 32
      %v1387 = vpop.permute.xlu0 %1386
      %1404 = vrot.lane.b32.xlu0 %v1283, 48
      %v1405 = vpop.permute.xlu0 %1404
      %1406 = vrot.lane.b32.xlu0 %v1284, 48
      %v1407 = vpop.permute.xlu0 %1406
      %1408 = vrot.lane.b32.xlu0 %v1285, 48
      %v1409 = vpop.permute.xlu0 %1408
      %1410 = vrot.lane.b32.xlu0 %v1286, 48
      %v1411 = vpop.permute.xlu0 %1410
      %1412 = vrot.lane.b32.xlu0 %v1287, 48
      %v1413 = vpop.permute.xlu0 %1412
      %1414 = vrot.lane.b32.xlu0 %v1288, 48
      %v1415 = vpop.permute.xlu0 %1414
      %1416 = vrot.lane.b32.xlu0 %v1289, 48
      %v1417 = vpop.permute.xlu0 %1416
      %1418 = vrot.lane.b32.xlu0 %v1290, 48
      %v1419 = vpop.permute.xlu0 %1418
      %1436 = vrot.lane.b32.xlu0 %v1291, 64
      %v1437 = vpop.permute.xlu0 %1436
      %1438 = vrot.lane.b32.xlu0 %v1292, 64
      %v1439 = vpop.permute.xlu0 %1438
      %1440 = vrot.lane.b32.xlu0 %v1293, 64
      %v1441 = vpop.permute.xlu0 %1440
      %1442 = vrot.lane.b32.xlu0 %v1294, 64
      %v1443 = vpop.permute.xlu0 %1442
      %1444 = vrot.lane.b32.xlu0 %v1295, 64
      %v1445 = vpop.permute.xlu0 %1444
      %1446 = vrot.lane.b32.xlu0 %v1296, 64
      %v1447 = vpop.permute.xlu0 %1446
      %1448 = vrot.lane.b32.xlu0 %v1297, 64
      %v1449 = vpop.permute.xlu0 %1448
      %1450 = vrot.lane.b32.xlu0 %v1298, 64
      %v1451 = vpop.permute.xlu0 %1450
      %1468 = vrot.lane.b32.xlu0 %v1299, 80
      %v1469 = vpop.permute.xlu0 %1468
      %1470 = vrot.lane.b32.xlu0 %v1300, 80
      %v1471 = vpop.permute.xlu0 %1470
      %1472 = vrot.lane.b32.xlu0 %v1301, 80
      %v1473 = vpop.permute.xlu0 %1472
      %1474 = vrot.lane.b32.xlu0 %v1302, 80
      %v1475 = vpop.permute.xlu0 %1474
      %1476 = vrot.lane.b32.xlu0 %v1303, 80
      %v1477 = vpop.permute.xlu0 %1476
      %1478 = vrot.lane.b32.xlu0 %v1304, 80
      %v1479 = vpop.permute.xlu0 %1478
      %1480 = vrot.lane.b32.xlu0 %v1305, 80
      %v1481 = vpop.permute.xlu0 %1480
      %1482 = vrot.lane.b32.xlu0 %v1306, 80
      %v1483 = vpop.permute.xlu0 %1482
      %1500 = vrot.lane.b32.xlu0 %v1308, 96
      %v1501 = vpop.permute.xlu0 %1500
      %1502 = vrot.lane.b32.xlu0 %v1309, 96
      %v1503 = vpop.permute.xlu0 %1502
      %1504 = vrot.lane.b32.xlu0 %v1310, 96
      %v1505 = vpop.permute.xlu0 %1504
      %1506 = vrot.lane.b32.xlu0 %v1311, 96
      %v1507 = vpop.permute.xlu0 %1506
      %1508 = vrot.lane.b32.xlu0 %v1312, 96
      %v1509 = vpop.permute.xlu0 %1508
      %1510 = vrot.lane.b32.xlu0 %v1313, 96
      %v1511 = vpop.permute.xlu0 %1510
      %1512 = vrot.lane.b32.xlu0 %v1314, 96
      %v1513 = vpop.permute.xlu0 %1512
      %1514 = vrot.lane.b32.xlu0 %v1315, 96
      %v1515 = vpop.permute.xlu0 %1514
      %1532 = vrot.lane.b32.xlu0 %v1316, 112
      %v1533 = vpop.permute.xlu0 %1532
      %1534 = vrot.lane.b32.xlu0 %v1317, 112
      %v1535 = vpop.permute.xlu0 %1534
      %1536 = vrot.lane.b32.xlu0 %v1318, 112
      %v1537 = vpop.permute.xlu0 %1536
      %1538 = vrot.lane.b32.xlu0 %v1319, 112
      %v1539 = vpop.permute.xlu0 %1538
      %1540 = vrot.lane.b32.xlu0 %v1320, 112
      %v1541 = vpop.permute.xlu0 %1540
      %1542 = vrot.lane.b32.xlu0 %v1321, 112
      %v1543 = vpop.permute.xlu0 %1542
      %1544 = vrot.lane.b32.xlu0 %v1322, 112
      %v1545 = vpop.permute.xlu0 %1544
      %1546 = vrot.lane.b32.xlu0 %v1323, 112
      %v1547 = vpop.permute.xlu0 %1546
      %v1556 = vsel %vm663, %v1259, %v1341
      %v1557 = vsel %vm663, %v1260, %v1343
      %v1558 = vsel %vm663, %v1261, %v1345
      %v1559 = vsel %vm663, %v1262, %v1347
      %v1560 = vsel %vm663, %v1263, %v1349
      %v1561 = vsel %vm663, %v1264, %v1351
      %v1562 = vsel %vm663, %v1265, %v1353
      %v1563 = vsel %vm663, %v1266, %v1355
      %v1564 = vsel %vm999, %v1556, %v1373
      %v1565 = vsel %vm999, %v1557, %v1375
      %v1566 = vsel %vm999, %v1558, %v1377
      %v1567 = vsel %vm999, %v1559, %v1379
      %v1568 = vsel %vm999, %v1560, %v1381
      %v1569 = vsel %vm999, %v1561, %v1383
      %v1570 = vsel %vm999, %v1562, %v1385
      %v1571 = vsel %vm999, %v1563, %v1387
      %v1572 = vsel %vm509, %v1564, %v1405
      %v1573 = vsel %vm509, %v1565, %v1407
      %v1574 = vsel %vm509, %v1566, %v1409
      %v1575 = vsel %vm509, %v1567, %v1411
      %v1576 = vsel %vm509, %v1568, %v1413
      %v1577 = vsel %vm509, %v1569, %v1415
      %v1578 = vsel %vm509, %v1570, %v1417
      %v1579 = vsel %vm509, %v1571, %v1419
      %v1580 = vsel %vm1016, %v1572, %v1437
      %v1581 = vsel %vm1016, %v1573, %v1439
      %v1582 = vsel %vm1016, %v1574, %v1441
      %v1583 = vsel %vm1016, %v1575, %v1443
      %v1584 = vsel %vm1016, %v1576, %v1445
      %v1585 = vsel %vm1016, %v1577, %v1447
      %v1586 = vsel %vm1016, %v1578, %v1449
      %v1587 = vsel %vm1016, %v1579, %v1451
      %v1588 = vsel %vm1025, %v1580, %v1469
      %v1589 = vsel %vm1025, %v1581, %v1471
      %v1590 = vsel %vm1025, %v1582, %v1473
      %v1591 = vsel %vm1025, %v1583, %v1475
      %v1592 = vsel %vm1025, %v1584, %v1477
      %v1593 = vsel %vm1025, %v1585, %v1479
      %v1594 = vsel %vm1025, %v1586, %v1481
      %v1595 = vsel %vm1025, %v1587, %v1483
      %v1596 = vsel %vm1034, %v1588, %v1501
      %v1597 = vsel %vm1034, %v1589, %v1503
      %v1598 = vsel %vm1034, %v1590, %v1505
      %v1599 = vsel %vm1034, %v1591, %v1507
      %v1600 = vsel %vm1034, %v1592, %v1509
      %v1601 = vsel %vm1034, %v1593, %v1511
      %v1602 = vsel %vm1034, %v1594, %v1513
      %v1603 = vsel %vm1034, %v1595, %v1515
      %v1604 = vsel %vm1043, %v1596, %v1533
      %v1605 = vsel %vm1043, %v1597, %v1535
      %v1606 = vsel %vm1043, %v1598, %v1537
      %v1607 = vsel %vm1043, %v1599, %v1539
      %v1608 = vsel %vm1043, %v1600, %v1541
      %v1609 = vsel %vm1043, %v1601, %v1543
      %v1610 = vsel %vm1043, %v1602, %v1545
      %v1611 = vsel %vm1043, %v1603, %v1547
      %v1612 = vld [vmem:[%s3] sm:$0xff]
      %v1613 = vld [vmem:[%s3 + $0x8] sm:$0xff]
      %v1614 = vld [vmem:[%s3 + $0x10] sm:$0xff]
      %v1615 = vld [vmem:[%s3 + $0x18] sm:$0xff]
      %v1616 = vld [vmem:[%s3 + $0x20] sm:$0xff]
      %v1617 = vld [vmem:[%s3 + $0x28] sm:$0xff]
      %v1618 = vld [vmem:[%s3 + $0x30] sm:$0xff]
      %v1619 = vld [vmem:[%s3 + $0x38] sm:$0xff]
      %v1620 = vld [vmem:[%s3 + $0x40] sm:$0xff]
      %v1621 = vld [vmem:[%s3 + $0x48] sm:$0xff]
      %v1622 = vld [vmem:[%s3 + $0x50] sm:$0xff]
      %v1623 = vld [vmem:[%s3 + $0x58] sm:$0xff]
      %v1624 = vld [vmem:[%s3 + $0x60] sm:$0xff]
      %v1625 = vld [vmem:[%s3 + $0x68] sm:$0xff]
      %v1626 = vld [vmem:[%s3 + $0x70] sm:$0xff]
      %v1627 = vld [vmem:[%s3 + $0x78] sm:$0xff]
      %v1628 = vld [vmem:[%s3 + $0x80] sm:$0xff]
      %v1629 = vld [vmem:[%s3 + $0x88] sm:$0xff]
      %v1630 = vld [vmem:[%s7] sm:$0x1]
      %v1632 = vlaneseq
      %v1633 = vshrl.u32 %v1632, 7
      %v1634 = vsub.s32 0, %v1633
      %v1635 = vrot.slane %v1630, %v1634
      %v1638 = vsel %vm663, %v1324, 0
      %v1641 = vsel %vm663, %v1325, 0
      %v1644 = vsel %vm663, %v1326, 0
      %v1647 = vsel %vm663, %v1327, 0
      %v1650 = vsel %vm663, %v1328, 0
      %v1653 = vsel %vm663, %v1329, 0
      %v1656 = vsel %vm663, %v1330, 0
      %v1659 = vsel %vm663, %v1331, 0
      %1661 = vmatprep.subr.mxu0 0.0
      %1662 = vmatpush1.msra.mxu0 %v1627
      %1663 = vmatprep.subr.mxu0 0.0
      %1664 = vmatpush1.msra.mxu0 %v1626
      %1665 = vmatprep.subr.mxu0 0.0
      %1666 = vmatpush1.msra.mxu0 %v1625
      %1667 = vmatprep.subr.mxu0 0.0
      %1668 = vmatpush1.msra.mxu0 %v1624
      %1669 = vmatprep.subr.mxu0 0.0
      %1670 = vmatpush1.msra.mxu0 %v1623
      %1671 = vmatprep.subr.mxu0 0.0
      %1672 = vmatpush1.msra.mxu0 %v1622
      %1673 = vmatprep.subr.mxu0 0.0
      %1674 = vmatpush1.msra.mxu0 %v1621
      %1675 = vmatprep.subr.mxu0 0.0
      %1676 = vmatpush1.msra.mxu0 %v1620
      %1677 = vmatprep.subr.mxu0 0.0
      %1678 = vmatpush1.msra.mxu0 %v1619
      %1679 = vmatprep.subr.mxu0 0.0
      %1680 = vmatpush1.msra.mxu0 %v1618
      %1681 = vmatprep.subr.mxu0 0.0
      %1682 = vmatpush1.msra.mxu0 %v1617
      %1683 = vmatprep.subr.mxu0 0.0
      %1684 = vmatpush1.msra.mxu0 %v1616
      %1685 = vmatprep.subr.mxu0 0.0
      %1686 = vmatpush1.msra.mxu0 %v1615
      %1687 = vmatprep.subr.mxu0 0.0
      %1688 = vmatpush1.msra.mxu0 %v1614
      %1689 = vmatprep.subr.mxu0 0.0
      %1690 = vmatpush1.msra.mxu0 %v1613
      %1691 = vmatprep.subr.mxu0 0.0
      %1692 = vmatpush1.msra.mxu0 %v1612
      %1693 = vmatprep.subr.mxu0 0.0
      %1694 = vmatpush2.msra.mxu0 0.0
      %1695 = vmatprep.subr.mxu0 0.0
      %1696 = vmatpush2.msra.mxu0 0.0
      %1697 = vmatprep.subr.mxu0 0.0
      %1698 = vmatpush2.msra.mxu0 0.0
      %1699 = vmatprep.subr.mxu0 0.0
      %1700 = vmatpush2.msra.mxu0 0.0
      %1701 = vmatprep.subr.mxu0 0.0
      %1702 = vmatpush2.msra.mxu0 0.0
      %1703 = vmatprep.subr.mxu0 0.0
      %1704 = vmatpush2.msra.mxu0 0.0
      %1705 = vmatprep.subr.mxu0 0.0
      %1706 = vmatpush2.msra.mxu0 0.0
      %1707 = vmatprep.subr.mxu0 0.0
      %1708 = vmatpush2.msra.mxu0 0.0
      %1709 = vmatprep.subr.mxu0 0.0
      %1710 = vmatpush2.msra.mxu0 0.0
      %1711 = vmatprep.subr.mxu0 0.0
      %1712 = vmatpush2.msra.mxu0 0.0
      %1713 = vmatprep.subr.mxu0 0.0
      %1714 = vmatpush2.msra.mxu0 0.0
      %1715 = vmatprep.subr.mxu0 0.0
      %1716 = vmatpush2.msra.mxu0 0.0
      %1717 = vmatprep.subr.mxu0 0.0
      %1718 = vmatpush2.msra.mxu0 0.0
      %1719 = vmatprep.subr.mxu0 0.0
      %1720 = vmatpush2.msra.mxu0 0.0
      %1721 = vmatprep.subr.mxu0 0.0
      %1722 = vmatpush2.msra.mxu0 %v1629
      %1723 = vmatprep.subr.mxu0 0.0
      %1724 = vmatpush2.msra.mxu0 %v1628
      %1725 = vmatprep.mubr.f32.mxu0 %v1638
      %1726 = vmatmul.mubr.f32.gmra.mxu0 %v1604
      %v1727 = vpop.f32.mrf.mxu0
      %v1728 = vadd.f32 %v1635, %v1727
      %v1729 = vpop.f32.mrf.mxu0
      %1730 = vmatprep.mubr.f32.mxu0 %v1641
      %1731 = vmatmul.mubr.f32.gmra.mxu0 %v1605
      %v1732 = vpop.f32.mrf.mxu0
      %v1733 = vadd.f32 %v1635, %v1732
      %v1734 = vpop.f32.mrf.mxu0
      %1735 = vmatprep.mubr.f32.mxu0 %v1644
      %1736 = vmatmul.mubr.f32.gmra.mxu0 %v1606
      %v1737 = vpop.f32.mrf.mxu0
      %v1738 = vadd.f32 %v1635, %v1737
      %v1739 = vpop.f32.mrf.mxu0
      %1740 = vmatprep.mubr.f32.mxu0 %v1647
      %1741 = vmatmul.mubr.f32.gmra.mxu0 %v1607
      %v1742 = vpop.f32.mrf.mxu0
      %v1743 = vadd.f32 %v1635, %v1742
      %v1744 = vpop.f32.mrf.mxu0
      %1745 = vmatprep.mubr.f32.mxu0 %v1650
      %1746 = vmatmul.mubr.f32.gmra.mxu0 %v1608
      %v1747 = vpop.f32.mrf.mxu0
      %v1748 = vadd.f32 %v1635, %v1747
      %v1749 = vpop.f32.mrf.mxu0
      %1750 = vmatprep.mubr.f32.mxu0 %v1653
      %1751 = vmatmul.mubr.f32.gmra.mxu0 %v1609
      %v1752 = vpop.f32.mrf.mxu0
      %v1753 = vadd.f32 %v1635, %v1752
      %v1754 = vpop.f32.mrf.mxu0
      %1755 = vmatprep.mubr.f32.mxu0 %v1656
      %1756 = vmatmul.mubr.f32.gmra.mxu0 %v1610
      %v1757 = vpop.f32.mrf.mxu0
      %v1758 = vadd.f32 %v1635, %v1757
      %v1759 = vpop.f32.mrf.mxu0
      %1760 = vmatprep.mubr.f32.mxu0 %v1659
      %1761 = vmatmul.mubr.f32.gmra.mxu0 %v1611
      %v1762 = vpop.f32.mrf.mxu0
      %v1763 = vadd.f32 %v1635, %v1762
      %v1764 = vpop.f32.mrf.mxu0
      %1765 = vdwg.mxu0
      %vm1766 = vcmp.ge.f32.partialorder %v1728, 0.0
      %vm1767 = vcmp.ge.f32.partialorder %v1733, 0.0
      %vm1768 = vcmp.ge.f32.partialorder %v1738, 0.0
      %vm1769 = vcmp.ge.f32.partialorder %v1743, 0.0
      %vm1770 = vcmp.ge.f32.partialorder %v1748, 0.0
      %vm1771 = vcmp.ge.f32.partialorder %v1753, 0.0
      %vm1772 = vcmp.ge.f32.partialorder %v1758, 0.0
      %vm1773 = vcmp.ge.f32.partialorder %v1763, 0.0
      %v1774 = vmul.f32 %v1728, 0.2
      %v1775 = vmul.f32 %v1733, 0.2
      %v1776 = vmul.f32 %v1738, 0.2
      %v1777 = vmul.f32 %v1743, 0.2
      %v1778 = vmul.f32 %v1748, 0.2
      %v1779 = vmul.f32 %v1753, 0.2
      %v1780 = vmul.f32 %v1758, 0.2
      %v1781 = vmul.f32 %v1763, 0.2
      %v1782 = vsel %vm1766, %v1728, %v1774
      %v1783 = vsel %vm1767, %v1733, %v1775
      %v1784 = vsel %vm1768, %v1738, %v1776
      %v1785 = vsel %vm1769, %v1743, %v1777
      %v1786 = vsel %vm1770, %v1748, %v1778
      %v1787 = vsel %vm1771, %v1753, %v1779
      %v1788 = vsel %vm1772, %v1758, %v1780
      %v1789 = vsel %vm1773, %v1763, %v1781
      %1790 = vst.msk [vmem:[#allocation4] sm:$0xff] %vm663, 0.0
      %1791 = vst.msk [vmem:[#allocation4 + $0x8] sm:$0x3] %vm665, 0.0
      %1792 = vst.msk [vmem:[#allocation4 + $0x10] sm:$0xff] %vm663, 0.0
      %1793 = vst.msk [vmem:[#allocation4 + $0x18] sm:$0x3] %vm665, 0.0
      %1794 = vst.msk [vmem:[#allocation4 + $0x20] sm:$0xff] %vm663, 0.0
      %1795 = vst.msk [vmem:[#allocation4 + $0x28] sm:$0x3] %vm665, 0.0
      %1796 = vst.msk [vmem:[#allocation4 + $0x30] sm:$0xff] %vm663, 0.0
      %1797 = vst.msk [vmem:[#allocation4 + $0x38] sm:$0x3] %vm665, 0.0
      %1798 = vst.msk [vmem:[#allocation4 + $0x40] sm:$0xff] %vm663, 0.0
      %1799 = vst.msk [vmem:[#allocation4 + $0x48] sm:$0x3] %vm665, 0.0
      %1800 = vst.msk [vmem:[#allocation4 + $0x50] sm:$0xff] %vm663, 0.0
      %1801 = vst.msk [vmem:[#allocation4 + $0x58] sm:$0x3] %vm665, 0.0
      %1802 = vst.msk [vmem:[#allocation4 + $0x60] sm:$0xff] %vm663, 0.0
      %1803 = vst.msk [vmem:[#allocation4 + $0x68] sm:$0x3] %vm665, 0.0
      %1804 = vst.msk [vmem:[#allocation4 + $0x70] sm:$0xff] %vm663, 0.0
      %1805 = vst.msk [vmem:[#allocation4 + $0x78] sm:$0x3] %vm665, 0.0
      %1806 = vst.msk [vmem:[#allocation4 + $0x80] sm:$0xff] %vm663, 0.0
      %1807 = vst.msk [vmem:[#allocation4 + $0x88] sm:$0x3] %vm665, 0.0
      %1808 = vst.msk [vmem:[#allocation4 + $0x90] sm:$0xff] %vm663, 0.0
      %1809 = vst.msk [vmem:[#allocation4 + $0x98] sm:$0x3] %vm665, 0.0
      %s1810 = scalar_lea.vmem [#allocation4], 16
      %1811 = vst.msk [vmem:[%s1810 + $0x1] sm:$0xff] %vm663, %v1782
      %1812 = vst.msk [vmem:[%s1810 + $0x11] sm:$0xff] %vm663, %v1783
      %1813 = vst.msk [vmem:[%s1810 + $0x21] sm:$0xff] %vm663, %v1784
      %1814 = vst.msk [vmem:[%s1810 + $0x31] sm:$0xff] %vm663, %v1785
      %1815 = vst.msk [vmem:[%s1810 + $0x41] sm:$0xff] %vm663, %v1786
      %1816 = vst.msk [vmem:[%s1810 + $0x51] sm:$0xff] %vm663, %v1787
      %1817 = vst.msk [vmem:[%s1810 + $0x61] sm:$0xff] %vm663, %v1788
      %1818 = vst.msk [vmem:[%s1810 + $0x71] sm:$0xff] %vm663, %v1789
      %v1819 = vld [vmem:[#allocation4] sm:$0xff]
      %v1820 = vld [vmem:[#allocation4 + $0x10] sm:$0xff]
      %v1821 = vld [vmem:[#allocation4 + $0x20] sm:$0xff]
      %v1822 = vld [vmem:[#allocation4 + $0x30] sm:$0xff]
      %v1823 = vld [vmem:[#allocation4 + $0x40] sm:$0xff]
      %v1824 = vld [vmem:[#allocation4 + $0x50] sm:$0xff]
      %v1825 = vld [vmem:[#allocation4 + $0x60] sm:$0xff]
      %v1826 = vld [vmem:[#allocation4 + $0x70] sm:$0xff]
      %v1827 = vld [vmem:[#allocation4 + $0x1] sm:$0xff]
      %v1828 = vld [vmem:[#allocation4 + $0x11] sm:$0xff]
      %v1829 = vld [vmem:[#allocation4 + $0x21] sm:$0xff]
      %v1830 = vld [vmem:[#allocation4 + $0x31] sm:$0xff]
      %v1831 = vld [vmem:[#allocation4 + $0x41] sm:$0xff]
      %v1832 = vld [vmem:[#allocation4 + $0x51] sm:$0xff]
      %v1833 = vld [vmem:[#allocation4 + $0x61] sm:$0xff]
      %v1834 = vld [vmem:[#allocation4 + $0x71] sm:$0xff]
      %v1835 = vld [vmem:[#allocation4 + $0x2] sm:$0xff]
      %v1836 = vld [vmem:[#allocation4 + $0x12] sm:$0xff]
      %v1837 = vld [vmem:[#allocation4 + $0x22] sm:$0xff]
      %v1838 = vld [vmem:[#allocation4 + $0x32] sm:$0xff]
      %v1839 = vld [vmem:[#allocation4 + $0x42] sm:$0xff]
      %v1840 = vld [vmem:[#allocation4 + $0x52] sm:$0xff]
      %v1841 = vld [vmem:[#allocation4 + $0x62] sm:$0xff]
      %v1842 = vld [vmem:[#allocation4 + $0x72] sm:$0xff]
      %v1843 = vld [vmem:[%s1810] sm:$0xff]
      %v1844 = vld [vmem:[%s1810 + $0x10] sm:$0xff]
      %v1845 = vld [vmem:[%s1810 + $0x20] sm:$0xff]
      %v1846 = vld [vmem:[%s1810 + $0x30] sm:$0xff]
      %v1847 = vld [vmem:[%s1810 + $0x40] sm:$0xff]
      %v1848 = vld [vmem:[%s1810 + $0x50] sm:$0xff]
      %v1849 = vld [vmem:[%s1810 + $0x60] sm:$0xff]
      %v1850 = vld [vmem:[%s1810 + $0x70] sm:$0xff]
      %v1851 = vld [vmem:[%s1810 + $0x1] sm:$0xff]
      %v1852 = vld [vmem:[%s1810 + $0x11] sm:$0xff]
      %v1853 = vld [vmem:[%s1810 + $0x21] sm:$0xff]
      %v1854 = vld [vmem:[%s1810 + $0x31] sm:$0xff]
      %v1855 = vld [vmem:[%s1810 + $0x41] sm:$0xff]
      %v1856 = vld [vmem:[%s1810 + $0x51] sm:$0xff]
      %v1857 = vld [vmem:[%s1810 + $0x61] sm:$0xff]
      %v1858 = vld [vmem:[%s1810 + $0x71] sm:$0xff]
      %v1859 = vld [vmem:[%s1810 + $0x2] sm:$0xff]
      %v1860 = vld [vmem:[%s1810 + $0x12] sm:$0xff]
      %v1861 = vld [vmem:[%s1810 + $0x22] sm:$0xff]
      %v1862 = vld [vmem:[%s1810 + $0x32] sm:$0xff]
      %v1863 = vld [vmem:[%s1810 + $0x42] sm:$0xff]
      %v1864 = vld [vmem:[%s1810 + $0x52] sm:$0xff]
      %v1865 = vld [vmem:[%s1810 + $0x62] sm:$0xff]
      %v1866 = vld [vmem:[%s1810 + $0x72] sm:$0xff]
      %s1867 = scalar_lea.vmem [#allocation4], 32
      %v1868 = vld [vmem:[%s1867] sm:$0xff]
      %v1869 = vld [vmem:[%s1867 + $0x10] sm:$0xff]
      %v1870 = vld [vmem:[%s1867 + $0x20] sm:$0xff]
      %v1871 = vld [vmem:[%s1867 + $0x30] sm:$0xff]
      %v1872 = vld [vmem:[%s1867 + $0x40] sm:$0xff]
      %v1873 = vld [vmem:[%s1867 + $0x50] sm:$0xff]
      %v1874 = vld [vmem:[%s1867 + $0x60] sm:$0xff]
      %v1875 = vld [vmem:[%s1867 + $0x70] sm:$0xff]
      %v1876 = vld [vmem:[%s1867 + $0x1] sm:$0xff]
      %v1877 = vld [vmem:[%s1867 + $0x11] sm:$0xff]
      %v1878 = vld [vmem:[%s1867 + $0x21] sm:$0xff]
      %v1879 = vld [vmem:[%s1867 + $0x31] sm:$0xff]
      %v1880 = vld [vmem:[%s1867 + $0x41] sm:$0xff]
      %v1881 = vld [vmem:[%s1867 + $0x51] sm:$0xff]
      %v1882 = vld [vmem:[%s1867 + $0x61] sm:$0xff]
      %v1883 = vld [vmem:[%s1867 + $0x71] sm:$0xff]
      %v1884 = vld [vmem:[%s1867 + $0x2] sm:$0xff]
      %v1885 = vld [vmem:[%s1867 + $0x12] sm:$0xff]
      %v1886 = vld [vmem:[%s1867 + $0x22] sm:$0xff]
      %v1887 = vld [vmem:[%s1867 + $0x32] sm:$0xff]
      %v1888 = vld [vmem:[%s1867 + $0x42] sm:$0xff]
      %v1889 = vld [vmem:[%s1867 + $0x52] sm:$0xff]
      %v1890 = vld [vmem:[%s1867 + $0x62] sm:$0xff]
      %v1891 = vld [vmem:[%s1867 + $0x72] sm:$0xff]
      %1900 = vrot.lane.b32.xlu0 %v1827, 16
      %v1901 = vpop.permute.xlu0 %1900
      %1902 = vrot.lane.b32.xlu0 %v1828, 16
      %v1903 = vpop.permute.xlu0 %1902
      %1904 = vrot.lane.b32.xlu0 %v1829, 16
      %v1905 = vpop.permute.xlu0 %1904
      %1906 = vrot.lane.b32.xlu0 %v1830, 16
      %v1907 = vpop.permute.xlu0 %1906
      %1908 = vrot.lane.b32.xlu0 %v1831, 16
      %v1909 = vpop.permute.xlu0 %1908
      %1910 = vrot.lane.b32.xlu0 %v1832, 16
      %v1911 = vpop.permute.xlu0 %1910
      %1912 = vrot.lane.b32.xlu0 %v1833, 16
      %v1913 = vpop.permute.xlu0 %1912
      %1914 = vrot.lane.b32.xlu0 %v1834, 16
      %v1915 = vpop.permute.xlu0 %1914
      %1932 = vrot.lane.b32.xlu0 %v1835, 32
      %v1933 = vpop.permute.xlu0 %1932
      %1934 = vrot.lane.b32.xlu0 %v1836, 32
      %v1935 = vpop.permute.xlu0 %1934
      %1936 = vrot.lane.b32.xlu0 %v1837, 32
      %v1937 = vpop.permute.xlu0 %1936
      %1938 = vrot.lane.b32.xlu0 %v1838, 32
      %v1939 = vpop.permute.xlu0 %1938
      %1940 = vrot.lane.b32.xlu0 %v1839, 32
      %v1941 = vpop.permute.xlu0 %1940
      %1942 = vrot.lane.b32.xlu0 %v1840, 32
      %v1943 = vpop.permute.xlu0 %1942
      %1944 = vrot.lane.b32.xlu0 %v1841, 32
      %v1945 = vpop.permute.xlu0 %1944
      %1946 = vrot.lane.b32.xlu0 %v1842, 32
      %v1947 = vpop.permute.xlu0 %1946
      %1964 = vrot.lane.b32.xlu0 %v1843, 48
      %v1965 = vpop.permute.xlu0 %1964
      %1966 = vrot.lane.b32.xlu0 %v1844, 48
      %v1967 = vpop.permute.xlu0 %1966
      %1968 = vrot.lane.b32.xlu0 %v1845, 48
      %v1969 = vpop.permute.xlu0 %1968
      %1970 = vrot.lane.b32.xlu0 %v1846, 48
      %v1971 = vpop.permute.xlu0 %1970
      %1972 = vrot.lane.b32.xlu0 %v1847, 48
      %v1973 = vpop.permute.xlu0 %1972
      %1974 = vrot.lane.b32.xlu0 %v1848, 48
      %v1975 = vpop.permute.xlu0 %1974
      %1976 = vrot.lane.b32.xlu0 %v1849, 48
      %v1977 = vpop.permute.xlu0 %1976
      %1978 = vrot.lane.b32.xlu0 %v1850, 48
      %v1979 = vpop.permute.xlu0 %1978
      %1996 = vrot.lane.b32.xlu0 %v1851, 64
      %v1997 = vpop.permute.xlu0 %1996
      %1998 = vrot.lane.b32.xlu0 %v1852, 64
      %v1999 = vpop.permute.xlu0 %1998
      %2000 = vrot.lane.b32.xlu0 %v1853, 64
      %v2001 = vpop.permute.xlu0 %2000
      %2002 = vrot.lane.b32.xlu0 %v1854, 64
      %v2003 = vpop.permute.xlu0 %2002
      %2004 = vrot.lane.b32.xlu0 %v1855, 64
      %v2005 = vpop.permute.xlu0 %2004
      %2006 = vrot.lane.b32.xlu0 %v1856, 64
      %v2007 = vpop.permute.xlu0 %2006
      %2008 = vrot.lane.b32.xlu0 %v1857, 64
      %v2009 = vpop.permute.xlu0 %2008
      %2010 = vrot.lane.b32.xlu0 %v1858, 64
      %v2011 = vpop.permute.xlu0 %2010
      %2028 = vrot.lane.b32.xlu0 %v1859, 80
      %v2029 = vpop.permute.xlu0 %2028
      %2030 = vrot.lane.b32.xlu0 %v1860, 80
      %v2031 = vpop.permute.xlu0 %2030
      %2032 = vrot.lane.b32.xlu0 %v1861, 80
      %v2033 = vpop.permute.xlu0 %2032
      %2034 = vrot.lane.b32.xlu0 %v1862, 80
      %v2035 = vpop.permute.xlu0 %2034
      %2036 = vrot.lane.b32.xlu0 %v1863, 80
      %v2037 = vpop.permute.xlu0 %2036
      %2038 = vrot.lane.b32.xlu0 %v1864, 80
      %v2039 = vpop.permute.xlu0 %2038
      %2040 = vrot.lane.b32.xlu0 %v1865, 80
      %v2041 = vpop.permute.xlu0 %2040
      %2042 = vrot.lane.b32.xlu0 %v1866, 80
      %v2043 = vpop.permute.xlu0 %2042
      %2060 = vrot.lane.b32.xlu0 %v1868, 96
      %v2061 = vpop.permute.xlu0 %2060
      %2062 = vrot.lane.b32.xlu0 %v1869, 96
      %v2063 = vpop.permute.xlu0 %2062
      %2064 = vrot.lane.b32.xlu0 %v1870, 96
      %v2065 = vpop.permute.xlu0 %2064
      %2066 = vrot.lane.b32.xlu0 %v1871, 96
      %v2067 = vpop.permute.xlu0 %2066
      %2068 = vrot.lane.b32.xlu0 %v1872, 96
      %v2069 = vpop.permute.xlu0 %2068
      %2070 = vrot.lane.b32.xlu0 %v1873, 96
      %v2071 = vpop.permute.xlu0 %2070
      %2072 = vrot.lane.b32.xlu0 %v1874, 96
      %v2073 = vpop.permute.xlu0 %2072
      %2074 = vrot.lane.b32.xlu0 %v1875, 96
      %v2075 = vpop.permute.xlu0 %2074
      %2092 = vrot.lane.b32.xlu0 %v1876, 112
      %v2093 = vpop.permute.xlu0 %2092
      %2094 = vrot.lane.b32.xlu0 %v1877, 112
      %v2095 = vpop.permute.xlu0 %2094
      %2096 = vrot.lane.b32.xlu0 %v1878, 112
      %v2097 = vpop.permute.xlu0 %2096
      %2098 = vrot.lane.b32.xlu0 %v1879, 112
      %v2099 = vpop.permute.xlu0 %2098
      %2100 = vrot.lane.b32.xlu0 %v1880, 112
      %v2101 = vpop.permute.xlu0 %2100
      %2102 = vrot.lane.b32.xlu0 %v1881, 112
      %v2103 = vpop.permute.xlu0 %2102
      %2104 = vrot.lane.b32.xlu0 %v1882, 112
      %v2105 = vpop.permute.xlu0 %2104
      %2106 = vrot.lane.b32.xlu0 %v1883, 112
      %v2107 = vpop.permute.xlu0 %2106
      %v2116 = vsel %vm663, %v1819, %v1901
      %v2117 = vsel %vm663, %v1820, %v1903
      %v2118 = vsel %vm663, %v1821, %v1905
      %v2119 = vsel %vm663, %v1822, %v1907
      %v2120 = vsel %vm663, %v1823, %v1909
      %v2121 = vsel %vm663, %v1824, %v1911
      %v2122 = vsel %vm663, %v1825, %v1913
      %v2123 = vsel %vm663, %v1826, %v1915
      %v2124 = vsel %vm999, %v2116, %v1933
      %v2125 = vsel %vm999, %v2117, %v1935
      %v2126 = vsel %vm999, %v2118, %v1937
      %v2127 = vsel %vm999, %v2119, %v1939
      %v2128 = vsel %vm999, %v2120, %v1941
      %v2129 = vsel %vm999, %v2121, %v1943
      %v2130 = vsel %vm999, %v2122, %v1945
      %v2131 = vsel %vm999, %v2123, %v1947
      %v2132 = vsel %vm509, %v2124, %v1965
      %v2133 = vsel %vm509, %v2125, %v1967
      %v2134 = vsel %vm509, %v2126, %v1969
      %v2135 = vsel %vm509, %v2127, %v1971
      %v2136 = vsel %vm509, %v2128, %v1973
      %v2137 = vsel %vm509, %v2129, %v1975
      %v2138 = vsel %vm509, %v2130, %v1977
      %v2139 = vsel %vm509, %v2131, %v1979
      %v2140 = vsel %vm1016, %v2132, %v1997
      %v2141 = vsel %vm1016, %v2133, %v1999
      %v2142 = vsel %vm1016, %v2134, %v2001
      %v2143 = vsel %vm1016, %v2135, %v2003
      %v2144 = vsel %vm1016, %v2136, %v2005
      %v2145 = vsel %vm1016, %v2137, %v2007
      %v2146 = vsel %vm1016, %v2138, %v2009
      %v2147 = vsel %vm1016, %v2139, %v2011
      %v2148 = vsel %vm1025, %v2140, %v2029
      %v2149 = vsel %vm1025, %v2141, %v2031
      %v2150 = vsel %vm1025, %v2142, %v2033
      %v2151 = vsel %vm1025, %v2143, %v2035
      %v2152 = vsel %vm1025, %v2144, %v2037
      %v2153 = vsel %vm1025, %v2145, %v2039
      %v2154 = vsel %vm1025, %v2146, %v2041
      %v2155 = vsel %vm1025, %v2147, %v2043
      %v2156 = vsel %vm1034, %v2148, %v2061
      %v2157 = vsel %vm1034, %v2149, %v2063
      %v2158 = vsel %vm1034, %v2150, %v2065
      %v2159 = vsel %vm1034, %v2151, %v2067
      %v2160 = vsel %vm1034, %v2152, %v2069
      %v2161 = vsel %vm1034, %v2153, %v2071
      %v2162 = vsel %vm1034, %v2154, %v2073
      %v2163 = vsel %vm1034, %v2155, %v2075
      %v2164 = vsel %vm1043, %v2156, %v2093
      %v2165 = vsel %vm1043, %v2157, %v2095
      %v2166 = vsel %vm1043, %v2158, %v2097
      %v2167 = vsel %vm1043, %v2159, %v2099
      %v2168 = vsel %vm1043, %v2160, %v2101
      %v2169 = vsel %vm1043, %v2161, %v2103
      %v2170 = vsel %vm1043, %v2162, %v2105
      %v2171 = vsel %vm1043, %v2163, %v2107
      %v2172 = vld [vmem:[%s4] sm:$0xff]
      %v2173 = vld [vmem:[%s4 + $0x8] sm:$0xff]
      %v2174 = vld [vmem:[%s4 + $0x10] sm:$0xff]
      %v2175 = vld [vmem:[%s4 + $0x18] sm:$0xff]
      %v2176 = vld [vmem:[%s4 + $0x20] sm:$0xff]
      %v2177 = vld [vmem:[%s4 + $0x28] sm:$0xff]
      %v2178 = vld [vmem:[%s4 + $0x30] sm:$0xff]
      %v2179 = vld [vmem:[%s4 + $0x38] sm:$0xff]
      %v2180 = vld [vmem:[%s4 + $0x40] sm:$0xff]
      %v2181 = vld [vmem:[%s4 + $0x48] sm:$0xff]
      %v2182 = vld [vmem:[%s4 + $0x50] sm:$0xff]
      %v2183 = vld [vmem:[%s4 + $0x58] sm:$0xff]
      %v2184 = vld [vmem:[%s4 + $0x60] sm:$0xff]
      %v2185 = vld [vmem:[%s4 + $0x68] sm:$0xff]
      %v2186 = vld [vmem:[%s4 + $0x70] sm:$0xff]
      %v2187 = vld [vmem:[%s4 + $0x78] sm:$0xff]
      %v2188 = vld [vmem:[%s4 + $0x80] sm:$0xff]
      %v2189 = vld [vmem:[%s4 + $0x88] sm:$0xff]
      %v2190 = vld [vmem:[%s8] sm:$0x1]
      %v2192 = vlaneseq
      %v2193 = vshrl.u32 %v2192, 7
      %v2194 = vsub.s32 0, %v2193
      %v2195 = vrot.slane %v2190, %v2194
      %v2198 = vsel %vm663, %v1884, 0
      %v2201 = vsel %vm663, %v1885, 0
      %v2204 = vsel %vm663, %v1886, 0
      %v2207 = vsel %vm663, %v1887, 0
      %v2210 = vsel %vm663, %v1888, 0
      %v2213 = vsel %vm663, %v1889, 0
      %v2216 = vsel %vm663, %v1890, 0
      %v2219 = vsel %vm663, %v1891, 0
      %2221 = vmatprep.subr.mxu0 0.0
      %2222 = vmatpush1.msra.mxu0 %v2187
      %2223 = vmatprep.subr.mxu0 0.0
      %2224 = vmatpush1.msra.mxu0 %v2186
      %2225 = vmatprep.subr.mxu0 0.0
      %2226 = vmatpush1.msra.mxu0 %v2185
      %2227 = vmatprep.subr.mxu0 0.0
      %2228 = vmatpush1.msra.mxu0 %v2184
      %2229 = vmatprep.subr.mxu0 0.0
      %2230 = vmatpush1.msra.mxu0 %v2183
      %2231 = vmatprep.subr.mxu0 0.0
      %2232 = vmatpush1.msra.mxu0 %v2182
      %2233 = vmatprep.subr.mxu0 0.0
      %2234 = vmatpush1.msra.mxu0 %v2181
      %2235 = vmatprep.subr.mxu0 0.0
      %2236 = vmatpush1.msra.mxu0 %v2180
      %2237 = vmatprep.subr.mxu0 0.0
      %2238 = vmatpush1.msra.mxu0 %v2179
      %2239 = vmatprep.subr.mxu0 0.0
      %2240 = vmatpush1.msra.mxu0 %v2178
      %2241 = vmatprep.subr.mxu0 0.0
      %2242 = vmatpush1.msra.mxu0 %v2177
      %2243 = vmatprep.subr.mxu0 0.0
      %2244 = vmatpush1.msra.mxu0 %v2176
      %2245 = vmatprep.subr.mxu0 0.0
      %2246 = vmatpush1.msra.mxu0 %v2175
      %2247 = vmatprep.subr.mxu0 0.0
      %2248 = vmatpush1.msra.mxu0 %v2174
      %2249 = vmatprep.subr.mxu0 0.0
      %2250 = vmatpush1.msra.mxu0 %v2173
      %2251 = vmatprep.subr.mxu0 0.0
      %2252 = vmatpush1.msra.mxu0 %v2172
      %2253 = vmatprep.subr.mxu0 0.0
      %2254 = vmatpush2.msra.mxu0 0.0
      %2255 = vmatprep.subr.mxu0 0.0
      %2256 = vmatpush2.msra.mxu0 0.0
      %2257 = vmatprep.subr.mxu0 0.0
      %2258 = vmatpush2.msra.mxu0 0.0
      %2259 = vmatprep.subr.mxu0 0.0
      %2260 = vmatpush2.msra.mxu0 0.0
      %2261 = vmatprep.subr.mxu0 0.0
      %2262 = vmatpush2.msra.mxu0 0.0
      %2263 = vmatprep.subr.mxu0 0.0
      %2264 = vmatpush2.msra.mxu0 0.0
      %2265 = vmatprep.subr.mxu0 0.0
      %2266 = vmatpush2.msra.mxu0 0.0
      %2267 = vmatprep.subr.mxu0 0.0
      %2268 = vmatpush2.msra.mxu0 0.0
      %2269 = vmatprep.subr.mxu0 0.0
      %2270 = vmatpush2.msra.mxu0 0.0
      %2271 = vmatprep.subr.mxu0 0.0
      %2272 = vmatpush2.msra.mxu0 0.0
      %2273 = vmatprep.subr.mxu0 0.0
      %2274 = vmatpush2.msra.mxu0 0.0
      %2275 = vmatprep.subr.mxu0 0.0
      %2276 = vmatpush2.msra.mxu0 0.0
      %2277 = vmatprep.subr.mxu0 0.0
      %2278 = vmatpush2.msra.mxu0 0.0
      %2279 = vmatprep.subr.mxu0 0.0
      %2280 = vmatpush2.msra.mxu0 0.0
      %2281 = vmatprep.subr.mxu0 0.0
      %2282 = vmatpush2.msra.mxu0 %v2189
      %2283 = vmatprep.subr.mxu0 0.0
      %2284 = vmatpush2.msra.mxu0 %v2188
      %2285 = vmatprep.mubr.f32.mxu0 %v2198
      %2286 = vmatmul.mubr.f32.gmra.mxu0 %v2164
      %v2287 = vpop.f32.mrf.mxu0
      %v2288 = vadd.f32 %v2195, %v2287
      %v2289 = vpop.f32.mrf.mxu0
      %2290 = vmatprep.mubr.f32.mxu0 %v2201
      %2291 = vmatmul.mubr.f32.gmra.mxu0 %v2165
      %v2292 = vpop.f32.mrf.mxu0
      %v2293 = vadd.f32 %v2195, %v2292
      %v2294 = vpop.f32.mrf.mxu0
      %2295 = vmatprep.mubr.f32.mxu0 %v2204
      %2296 = vmatmul.mubr.f32.gmra.mxu0 %v2166
      %v2297 = vpop.f32.mrf.mxu0
      %v2298 = vadd.f32 %v2195, %v2297
      %v2299 = vpop.f32.mrf.mxu0
      %2300 = vmatprep.mubr.f32.mxu0 %v2207
      %2301 = vmatmul.mubr.f32.gmra.mxu0 %v2167
      %v2302 = vpop.f32.mrf.mxu0
      %v2303 = vadd.f32 %v2195, %v2302
      %v2304 = vpop.f32.mrf.mxu0
      %2305 = vmatprep.mubr.f32.mxu0 %v2210
      %2306 = vmatmul.mubr.f32.gmra.mxu0 %v2168
      %v2307 = vpop.f32.mrf.mxu0
      %v2308 = vadd.f32 %v2195, %v2307
      %v2309 = vpop.f32.mrf.mxu0
      %2310 = vmatprep.mubr.f32.mxu0 %v2213
      %2311 = vmatmul.mubr.f32.gmra.mxu0 %v2169
      %v2312 = vpop.f32.mrf.mxu0
      %v2313 = vadd.f32 %v2195, %v2312
      %v2314 = vpop.f32.mrf.mxu0
      %2315 = vmatprep.mubr.f32.mxu0 %v2216
      %2316 = vmatmul.mubr.f32.gmra.mxu0 %v2170
      %v2317 = vpop.f32.mrf.mxu0
      %v2318 = vadd.f32 %v2195, %v2317
      %v2319 = vpop.f32.mrf.mxu0
      %2320 = vmatprep.mubr.f32.mxu0 %v2219
      %2321 = vmatmul.mubr.f32.gmra.mxu0 %v2171
      %v2322 = vpop.f32.mrf.mxu0
      %v2323 = vadd.f32 %v2195, %v2322
      %v2324 = vpop.f32.mrf.mxu0
      %2325 = vdwg.mxu0
      %2326 = vst.msk [vmem:[%s332] sm:$0xff] %vm663, %v2288
      %2327 = vst.msk [vmem:[%s332 + $0x8] sm:$0xff] %vm663, %v2293
      %2328 = vst.msk [vmem:[%s332 + $0x10] sm:$0xff] %vm663, %v2298
      %2329 = vst.msk [vmem:[%s332 + $0x18] sm:$0xff] %vm663, %v2303
      %2330 = vst.msk [vmem:[%s332 + $0x20] sm:$0xff] %vm663, %v2308
      %2331 = vst.msk [vmem:[%s332 + $0x28] sm:$0xff] %vm663, %v2313
      %2332 = vst.msk [vmem:[%s332 + $0x30] sm:$0xff] %vm663, %v2318
      %2333 = vst.msk [vmem:[%s332 + $0x38] sm:$0xff] %vm663, %v2323
      %p2334 = scmp.lt.s32.totalorder %s20, 1
      %s2335 = scalar_select %p2334, %s20, 1
      %s2336 = smul.addr %s2335, 8
      %s2337 = smul.addr %s2336, 8
      %s2338 = scalar_lea.vmem %s9, %s2337
      // Predicated region
      $region57: #{head_forward.1} parent=55 // pred_check
        %p2339 = pneg %p232
      $region58: #{head_forward.1} parent=55 // pred_check_branch
        %2341 = sbr.rel (%p2339) target = $region60
      $region59: #{head_forward.1} parent=55 // pred_region
        _
      $region60: #{head_forward.1} parent=55 // pred_fallthru
        _
    $region56: #{head_forward.1} parent=5 // pred_fallthru
      _
    %p2342 = scmp.le.s32.totalorder 2, %s15
    // Predicated region
    $region61: #{head_forward.1} parent=5 // pred_check
      %p2343 = pneg %p2342
    $region62: #{head_forward.1} parent=5 // pred_check_branch
      %2345 = sbr.rel (%p2343) target = $region64
    $region63: #{head_forward.1} parent=5 // pred_region
      %s2346 = ssub.s32 %s15, 2
      // Predicated region
      $region65: #{head_forward.1} parent=63 // pred_check
        %p2347 = pneg %p238
      $region66: #{head_forward.1} parent=63 // pred_check_branch
        %2349 = sbr.rel (%p2347) target = $region68
      $region67: #{head_forward.1} parent=63 // pred_region
        %p2350 = scmp.lt.s32.totalorder %s21, 1
        %s2351 = scalar_select %p2350, %s21, 1
        %s2352 = smul.addr %s2351, 8
        %s2353 = smul.addr %s2352, 8
        %s2354 = scalar_lea.vmem %s9, %s2353
      $region68: #{head_forward.1} parent=63 // pred_fallthru
        _
    $region64: #{head_forward.1} parent=5 // pred_fallthru
      _
  $region6: #{head_forward.1} parent=0 // loop_footer
    %s19 = sadd.s32 1, %s15
  $region7: #{head_forward.1} parent=0 // loop_footer_branch
    %14 = sbr.rel target = $region3
  $region8: #{head_forward.1} parent=0 // loop_exit
    _

</llo_original>
